<compile_context>
chip_gen: v7x
topology: tpu7x:2x2x1
jax: 0.10.0
libtpu: 0.0.40
codegen_flags: <defaults>
</compile_context>

<pallas_src>
import functools
import math

import jax
import jax.numpy as jnp
import numpy as np
from jax.experimental import pallas as pl
from jax.experimental.pallas import tpu as pltpu

LN_EPS = 1e-5
_NEG_BIG = -1e30


def _layer_norm(x, gamma, beta):
    # x: (M, D) f32; gamma/beta: (1, D) f32
    mean = jnp.mean(x, axis=-1, keepdims=True)
    var = jnp.mean((x - mean) ** 2, axis=-1, keepdims=True)
    return (x - mean) * jax.lax.rsqrt(var + LN_EPS) * gamma + beta


def lane_kernel(q_ref, kv_ref, pos_ref, neg_ref, mask_ref,
                wq_ref, wk_ref, wv_ref, wo_ref,
                wc1_ref, bc1_ref, wc2_ref, bc2_ref,
                g1_ref, b1_ref, g2_ref, b2_ref,
                out_ref, *, num_heads, compute_dtype):
    M, D = q_ref.shape            # M = Bt*qn flattened (batch, query) rows
    cd = compute_dtype

    x = q_ref[...]                # (M, D)   compute dtype
    kv = kv_ref[...]              # (Mk, D)  compute dtype, Mk = Bt*kn
    mask = mask_ref[...]          # (M, Mk)  additive block-diag bias (0 / -1e30)

    # Multi-head attention. All matmuls are plain 2-D MXU ops: per-head
    # weights were pre-split in the wrapper (no in-kernel lane slicing of
    # activations), the batch dim is fused into rows, and cross-batch
    # attention is removed with the additive block-diagonal mask. The
    # 1/sqrt(d) scale was folded into wq wrapper-side.
    o_acc = jnp.zeros((M, D), jnp.float32)
    for h in range(num_heads):    # static unroll; num_heads is small
        qh = jnp.dot(x, wq_ref[h], preferred_element_type=jnp.float32)    # (M, d)
        kh = jnp.dot(kv, wk_ref[h], preferred_element_type=jnp.float32)   # (Mk, d)
        vh = jnp.dot(kv, wv_ref[h], preferred_element_type=jnp.float32)   # (Mk, d)

        s = jax.lax.dot_general(                                           # (M, Mk)
            qh.astype(cd), kh.astype(cd), (((1,), (1,)), ((), ())),
            preferred_element_type=jnp.float32) + mask
        s = s - jnp.max(s, axis=-1, keepdims=True)
        p = jnp.exp(s)            # un-normalized probabilities, values in [0, 1]
        inv = pl.reciprocal(jnp.sum(p, axis=-1, keepdims=True), approx=True)

        # Normalize after the P@V matmul on the small (M, d) tile instead of
        # on the (M, Mk) probability tile (row scaling commutes).
        ah = jnp.dot(p.astype(cd), vh.astype(cd),
                     preferred_element_type=jnp.float32) * inv             # (M, d)
        # Per-head slice of linear_output accumulated here -> no concat.
        o_acc = o_acc + jnp.dot(ah.astype(cd), wo_ref[h],
                                preferred_element_type=jnp.float32)        # (M, D)

    # linear_output + residual + layer_norm1 (f32 math)
    x1 = _layer_norm(o_acc + x.astype(jnp.float32), g1_ref[...], b1_ref[...])

    # PointWiseFeedForward: Conv1d(k=1) -> ReLU -> Conv1d(k=1), + residual
    h1 = jnp.dot(x1.astype(cd), wc1_ref[...],
                 preferred_element_type=jnp.float32) + bc1_ref[...]
    h1 = jnp.maximum(h1, 0.0)
    h2 = jnp.dot(h1.astype(cd), wc2_ref[...],
                 preferred_element_type=jnp.float32) + bc2_ref[...]
    att_feats = _layer_norm(h2 + x1, g2_ref[...], b2_ref[...])             # (M, D)

    # pos/neg logits: elementwise product + lane reduce (XLU), merged single
    # narrow output slab (output bytes are tiny: 2 lanes * M rows per step).
    pos_l = jnp.sum(att_feats * pos_ref[...].astype(jnp.float32),
                    axis=-1, keepdims=True)
    neg_l = jnp.sum(att_feats * neg_ref[...].astype(jnp.float32),
                    axis=-1, keepdims=True)
    out_ref[...] = jnp.concatenate([pos_l, neg_l], axis=-1)                # (M, 2)


def _pick_batch_tile(B, qn, kn, target_rows):
    """Largest batch tile whose fused row blocks stay (8,*)-aligned, whose M dim
    is ~target_rows, and (when possible) leaves >=2 grid steps (megacore / v7x
    dual TensorCore)."""
    def ok(bt):
        if B % bt:
            return False
        if bt == B:
            return True
        return (bt * qn) % 8 == 0 and (bt * kn) % 8 == 0

    cands = [bt for bt in range(1, B + 1) if ok(bt)]
    fits = [bt for bt in cands if bt * qn <= target_rows] or [min(cands)]
    multi = [bt for bt in fits if B // bt >= 2]
    return max(multi) if multi else max(fits)


def lane_forward(querys, k_and_v, pos_embs, neg_embs, params, *, num_heads,
                 compute_dtype=jnp.float32, target_rows=256):
    """Pallas forward. target_rows≈256 fits the v6e/v7x 256x256 MXU, use ≈128
    on v5e. Per-block VMEM here is tiny (tens of KiB); if qn/D grow, re-derive
    Bt against the 64 MiB (v7x) / 128 MiB (v5e, v6e) VMEM budget."""
    B, qn, D = querys.shape
    _, kn, _ = k_and_v.shape
    H = params["wq"].shape[0]
    d = H // num_heads
    norm_fact = 1.0 / math.sqrt(d)

    Bt = _pick_batch_tile(B, qn, kn, target_rows)
    M, Mk = Bt * qn, Bt * kn

    # One-time wrapper-side weight prep: transpose so the kernel does x @ W
    # directly, stack per-head slices so the kernel never lane-slices
    # activations or concatenates head outputs, and fold the 1/sqrt(d) score
    # scale into wq.
    def per_head_in(w):            # (H, D) -> (nh, D, d):  q_h = x @ w[h]
        return jnp.transpose(w.reshape(num_heads, d, D), (0, 2, 1))

    wq_h = (per_head_in(params["wq"]) * norm_fact).astype(compute_dtype)
    wk_h = per_head_in(params["wk"]).astype(compute_dtype)
    wv_h = per_head_in(params["wv"]).astype(compute_dtype)
    wo_h = params["wo"].T.reshape(num_heads, d, D).astype(compute_dtype)   # att_h @ wo[h]
    wc1_t = params["wc1"].T.astype(compute_dtype)
    wc2_t = params["wc2"].T.astype(compute_dtype)

    # Flatten (batch, seq) -> rows so every in-kernel matmul is 2-D with
    # M = Bt*qn rows (these reshapes are free wrapper-side XLA ops).
    q2d = querys.reshape(B * qn, D).astype(compute_dtype)
    kv2d = k_and_v.reshape(B * kn, D).astype(compute_dtype)
    pos2d = pos_embs.reshape(B * qn, D).astype(jnp.float32)  # logits kept in f32
    neg2d = neg_embs.reshape(B * qn, D).astype(jnp.float32)

    # Additive block-diagonal mask: a query row only attends to the keys of
    # its own batch row. Identical for every grid step -> built once here and
    # resident in VMEM (constant block index => single DMA).
    rb = np.arange(M) // qn
    cb = np.arange(Mk) // kn
    mask = jnp.asarray(np.where(rb[:, None] == cb[None, :], 0.0, _NEG_BIG),
                       dtype=jnp.float32)

    kernel = functools.partial(lane_kernel, num_heads=num_heads,
                               compute_dtype=compute_dtype)

    def row_spec(rows, cols):
        return pl.BlockSpec((rows, cols), lambda b: (b, 0))

    def w_spec(arr):
        nd = arr.ndim
        return pl.BlockSpec(arr.shape, lambda b, _n=nd: (0,) * _n)

    in_specs = [
        row_spec(M, D),            # querys rows
        row_spec(Mk, D),           # k_and_v rows
        row_spec(M, D),            # pos_embs rows
        row_spec(M, D),            # neg_embs rows
        w_spec(mask),
        w_spec(wq_h), w_spec(wk_h), w_spec(wv_h), w_spec(wo_h),
        w_spec(wc1_t), w_spec(params["bc1"]), w_spec(wc2_t), w_spec(params["bc2"]),
        w_spec(params["g1"]), w_spec(params["b1"]),
        w_spec(params["g2"]), w_spec(params["b2"]),
    ]
    out_specs = pl.BlockSpec((M, 2), lambda b: (b, 0))

    out = pl.pallas_call(
        kernel,
        out_shape=jax.ShapeDtypeStruct((B * qn, 2), jnp.float32),
        grid_spec=pltpu.PrefetchScalarGridSpec(
            num_scalar_prefetch=0,
            grid=(B // Bt,),
            in_specs=in_specs,
            out_specs=out_specs),
        compiler_params=pltpu.CompilerParams(
            dimension_semantics=("parallel",)),
    )(q2d, kv2d, pos2d, neg2d, mask,
      wq_h, wk_h, wv_h, wo_h,
      wc1_t, params["bc1"], wc2_t, params["bc2"],
      params["g1"], params["b1"], params["g2"], params["b2"])

    out = out.reshape(B, qn, 2)
    return out[..., 0], out[..., 1]


def lane_reference(querys, k_and_v, pos_embs, neg_embs, params, *, num_heads):
    """Pure-JAX mirror of the PyTorch forward (eval mode)."""
    B, qn, D = querys.shape
    H = params["wq"].shape[0]
    d = H // num_heads
    norm_fact = 1.0 / math.sqrt(d)

    q = (querys @ params["wq"].T).reshape(B, qn, num_heads, d).transpose(0, 2, 1, 3)
    k = (k_and_v @ params["wk"].T).reshape(B, -1, num_heads, d).transpose(0, 2, 1, 3)
    v = (k_and_v @ params["wv"].T).reshape(B, -1, num_heads, d).transpose(0, 2, 1, 3)
    scores = jnp.einsum("bhqd,bhkd->bhqk", q, k) * norm_fact
    w = jax.nn.softmax(scores, axis=-1)
    att = jnp.einsum("bhqk,bhkd->bhqd", w, v).transpose(0, 2, 1, 3).reshape(B, qn, H)

    def ln(x, g, b):
        m = x.mean(-1, keepdims=True)
        var = ((x - m) ** 2).mean(-1, keepdims=True)
        return (x - m) / jnp.sqrt(var + LN_EPS) * g + b

    x1 = ln(att @ params["wo"].T + querys, params["g1"], params["b1"])
    h1 = jnp.maximum(x1 @ params["wc1"].T + params["bc1"], 0.0)
    ffn = (h1 @ params["wc2"].T + params["bc2"]) + x1
    att_feats = ln(ffn, params["g2"], params["b2"])
    return (att_feats * pos_embs).sum(-1), (att_feats * neg_embs).sum(-1)


if __name__ == "__main__":
    # Small shapes consistent with the module: embedding_dim=32, hidden=32,
    # num_heads=2, batch=8, seq=8, 4 stacked key/value vectors, 50 items.
    B, QN, KN, D, H, NH, ITEMNUM = 8, 8, 4, 32, 32, 2, 50

    key = jax.random.PRNGKey(0)
    keys = jax.random.split(key, 16)

    params = {
        "wq": jax.random.normal(keys[0], (H, D), jnp.float32) * 0.1,
        "wk": jax.random.normal(keys[1], (H, D), jnp.float32) * 0.1,
        "wv": jax.random.normal(keys[2], (H, D), jnp.float32) * 0.1,
        "wo": jax.random.normal(keys[3], (D, H), jnp.float32) * 0.1,
        "g1": jnp.ones((1, D), jnp.float32),
        "b1": jnp.zeros((1, D), jnp.float32),
        "g2": jnp.ones((1, D), jnp.float32),
        "b2": jnp.zeros((1, D), jnp.float32),
        "wc1": jax.random.normal(keys[4], (D, D), jnp.float32) * 0.1,   # Conv1d k=1
        "bc1": jax.random.normal(keys[5], (1, D), jnp.float32) * 0.1,
        "wc2": jax.random.normal(keys[6], (D, D), jnp.float32) * 0.1,   # Conv1d k=1
        "bc2": jax.random.normal(keys[7], (1, D), jnp.float32) * 0.1,
    }

    # inte_model stand-ins (plain-JAX glue).
    item_emb = jax.random.normal(keys[8], (ITEMNUM + 1, D), jnp.float32) * 0.1
    querys = jax.random.normal(keys[9], (B, QN, D), jnp.float32)          # log2feats output
    k_and_v = jax.random.normal(keys[10], (B, KN, D), jnp.float32)        # torch.stack(k_and_v)
    pos_seqs = jax.random.randint(keys[11], (B, QN), 1, ITEMNUM + 1)
    neg_seqs = jax.random.randint(keys[12], (B, QN), 1, ITEMNUM + 1)
    pos_embs = item_emb[pos_seqs]                                          # (B, QN, D)
    neg_embs = item_emb[neg_seqs]

    ref_pos, ref_neg = lane_reference(
        querys, k_and_v, pos_embs, neg_embs, params, num_heads=NH)

    # f32 path (default; required for v5e elementwise math).
    pos_logits, neg_logits = lane_forward(
        querys, k_and_v, pos_embs, neg_embs, params, num_heads=NH,
        compute_dtype=jnp.float32)
    jax.block_until_ready((pos_logits, neg_logits))
    np.testing.assert_allclose(np.asarray(pos_logits), np.asarray(ref_pos),
                               rtol=5e-3, atol=5e-3)
    np.testing.assert_allclose(np.asarray(neg_logits), np.asarray(ref_neg),
                               rtol=5e-3, atol=5e-3)

    # bf16 MXU-operand path (v6e/v7x recommendation): bf16 matmul operands,
    # f32 accumulation, f32 softmax/layernorm.
    pos_bf, neg_bf = lane_forward(
        querys, k_and_v, pos_embs, neg_embs, params, num_heads=NH,
        compute_dtype=jnp.bfloat16)
    jax.block_until_ready((pos_bf, neg_bf))
    np.testing.assert_allclose(np.asarray(pos_bf), np.asarray(ref_pos),
                               rtol=1e-1, atol=1e-1)
    np.testing.assert_allclose(np.asarray(neg_bf), np.asarray(ref_neg),
                               rtol=1e-1, atol=1e-1)

    print("KERNEL_OK")
</pallas_src>

<mosaic_0001>
module attributes {stable_mosaic.version = 11 : i64} {
  func.func @lane_kernel(%arg0: i32, %arg1: memref<32x32xf32, #tpu.memory_space<vmem>>, %arg2: memref<16x32xf32, #tpu.memory_space<vmem>>, %arg3: memref<32x32xf32, #tpu.memory_space<vmem>>, %arg4: memref<32x32xf32, #tpu.memory_space<vmem>>, %arg5: memref<32x16xf32, #tpu.memory_space<vmem>>, %arg6: memref<2x32x16xf32, #tpu.memory_space<vmem>>, %arg7: memref<2x32x16xf32, #tpu.memory_space<vmem>>, %arg8: memref<2x32x16xf32, #tpu.memory_space<vmem>>, %arg9: memref<2x16x32xf32, #tpu.memory_space<vmem>>, %arg10: memref<32x32xf32, #tpu.memory_space<vmem>>, %arg11: memref<1x32xf32, #tpu.memory_space<vmem>>, %arg12: memref<32x32xf32, #tpu.memory_space<vmem>>, %arg13: memref<1x32xf32, #tpu.memory_space<vmem>>, %arg14: memref<1x32xf32, #tpu.memory_space<vmem>>, %arg15: memref<1x32xf32, #tpu.memory_space<vmem>>, %arg16: memref<1x32xf32, #tpu.memory_space<vmem>>, %arg17: memref<1x32xf32, #tpu.memory_space<vmem>>, %arg18: memref<32x2xf32, #tpu.memory_space<vmem>>) attributes {dimension_semantics = [#tpu.dimension_semantics<parallel>], iteration_bounds = array<i64: 2>, scalar_prefetch = 0 : i64, scratch_operands = 0 : i64, tpu.core_type = #tpu.core_type<tc>, window_params = [{transform_indices = @transform_0, window_bounds = array<i64: 32, 32>}, {transform_indices = @transform_1, window_bounds = array<i64: 16, 32>}, {transform_indices = @transform_2, window_bounds = array<i64: 32, 32>}, {transform_indices = @transform_3, window_bounds = array<i64: 32, 32>}, {pipeline_mode = #tpu.pipeline_mode<synchronous>, transform_indices = @transform_4, window_bounds = array<i64: 32, 16>}, {pipeline_mode = #tpu.pipeline_mode<synchronous>, transform_indices = @transform_5, window_bounds = array<i64: 2, 32, 16>}, {pipeline_mode = #tpu.pipeline_mode<synchronous>, transform_indices = @transform_6, window_bounds = array<i64: 2, 32, 16>}, {pipeline_mode = #tpu.pipeline_mode<synchronous>, transform_indices = @transform_7, window_bounds = array<i64: 2, 32, 16>}, {pipeline_mode = #tpu.pipeline_mode<synchronous>, transform_indices = @transform_8, window_bounds = array<i64: 2, 16, 32>}, {pipeline_mode = #tpu.pipeline_mode<synchronous>, transform_indices = @transform_9, window_bounds = array<i64: 32, 32>}, {pipeline_mode = #tpu.pipeline_mode<synchronous>, transform_indices = @transform_10, window_bounds = array<i64: 1, 32>}, {pipeline_mode = #tpu.pipeline_mode<synchronous>, transform_indices = @transform_11, window_bounds = array<i64: 32, 32>}, {pipeline_mode = #tpu.pipeline_mode<synchronous>, transform_indices = @transform_12, window_bounds = array<i64: 1, 32>}, {pipeline_mode = #tpu.pipeline_mode<synchronous>, transform_indices = @transform_13, window_bounds = array<i64: 1, 32>}, {pipeline_mode = #tpu.pipeline_mode<synchronous>, transform_indices = @transform_14, window_bounds = array<i64: 1, 32>}, {pipeline_mode = #tpu.pipeline_mode<synchronous>, transform_indices = @transform_15, window_bounds = array<i64: 1, 32>}, {pipeline_mode = #tpu.pipeline_mode<synchronous>, transform_indices = @transform_16, window_bounds = array<i64: 1, 32>}, {transform_indices = @transform_17, window_bounds = array<i64: 32, 2>}]} {
    %c0 = arith.constant 0 : index
    %c0_0 = arith.constant 0 : index
    %0 = vector.load %arg1[%c0, %c0_0] : memref<32x32xf32, #tpu.memory_space<vmem>>, vector<32x32xf32>
    %c0_1 = arith.constant 0 : index
    %c0_2 = arith.constant 0 : index
    %1 = vector.load %arg2[%c0_1, %c0_2] : memref<16x32xf32, #tpu.memory_space<vmem>>, vector<16x32xf32>
    %c0_3 = arith.constant 0 : index
    %c0_4 = arith.constant 0 : index
    %2 = vector.load %arg5[%c0_3, %c0_4] : memref<32x16xf32, #tpu.memory_space<vmem>>, vector<32x16xf32>
    %cst = arith.constant 0.000000e+00 : f32
    %3 = vector.broadcast %cst : f32 to vector<32x32xf32>
    %c0_5 = arith.constant 0 : index
    %c0_6 = arith.constant 0 : index
    %c0_7 = arith.constant 0 : index
    %4 = vector.load %arg6[%c0_5, %c0_6, %c0_7] : memref<2x32x16xf32, #tpu.memory_space<vmem>>, vector<1x32x16xf32>
    %5 = vector.shape_cast %4 : vector<1x32x16xf32> to vector<32x16xf32>
    %cst_8 = arith.constant dense<0.000000e+00> : vector<32x16xf32>
    %6 = tpu.matmul %0, %5, %cst_8 {dimension_numbers = #tpu.dot_dimension_numbers<[1], [0], [0], [1], [0, 0, 1, 1], [], []>} : vector<32x32xf32>, vector<32x16xf32>, vector<32x16xf32> -> vector<32x16xf32>
    %c0_9 = arith.constant 0 : index
    %c0_10 = arith.constant 0 : index
    %c0_11 = arith.constant 0 : index
    %7 = vector.load %arg7[%c0_9, %c0_10, %c0_11] : memref<2x32x16xf32, #tpu.memory_space<vmem>>, vector<1x32x16xf32>
    %8 = vector.shape_cast %7 : vector<1x32x16xf32> to vector<32x16xf32>
    %cst_12 = arith.constant dense<0.000000e+00> : vector<16x16xf32>
    %9 = tpu.matmul %1, %8, %cst_12 {dimension_numbers = #tpu.dot_dimension_numbers<[1], [0], [0], [1], [0, 0, 1, 1], [], []>} : vector<16x32xf32>, vector<32x16xf32>, vector<16x16xf32> -> vector<16x16xf32>
    %c0_13 = arith.constant 0 : index
    %c0_14 = arith.constant 0 : index
    %c0_15 = arith.constant 0 : index
    %10 = vector.load %arg8[%c0_13, %c0_14, %c0_15] : memref<2x32x16xf32, #tpu.memory_space<vmem>>, vector<1x32x16xf32>
    %11 = vector.shape_cast %10 : vector<1x32x16xf32> to vector<32x16xf32>
    %cst_16 = arith.constant dense<0.000000e+00> : vector<16x16xf32>
    %12 = tpu.matmul %1, %11, %cst_16 {dimension_numbers = #tpu.dot_dimension_numbers<[1], [0], [0], [1], [0, 0, 1, 1], [], []>} : vector<16x32xf32>, vector<32x16xf32>, vector<16x16xf32> -> vector<16x16xf32>
    %cst_17 = arith.constant dense<0.000000e+00> : vector<32x16xf32>
    %13 = tpu.matmul %6, %9, %cst_17 {dimension_numbers = #tpu.dot_dimension_numbers<[1], [1], [0], [0], [0, 0, 1, 0], [], []>} : vector<32x16xf32>, vector<16x16xf32>, vector<32x16xf32> -> vector<32x16xf32>
    %14 = arith.addf %13, %2 : vector<32x16xf32>
    %cst_18 = arith.constant dense<0xFF800000> : vector<32xf32>
    %15 = vector.multi_reduction <maximumf>, %14, %cst_18 [1] : vector<32x16xf32> to vector<32xf32>
    %16 = vector.shape_cast %15 : vector<32xf32> to vector<32x1xf32>
    %17 = vector.broadcast %16 : vector<32x1xf32> to vector<32x16xf32>
    %18 = arith.subf %14, %17 : vector<32x16xf32>
    %19 = math.exp %18 : vector<32x16xf32>
    %cst_19 = arith.constant dense<0.000000e+00> : vector<32xf32>
    %20 = vector.multi_reduction <add>, %19, %cst_19 [1] : vector<32x16xf32> to vector<32xf32>
    %21 = vector.shape_cast %20 : vector<32xf32> to vector<32x1xf32>
    %22 = tpu.reciprocal %21 {approx = true} : vector<32x1xf32> -> vector<32x1xf32>
    %cst_20 = arith.constant dense<0.000000e+00> : vector<32x16xf32>
    %23 = tpu.matmul %19, %12, %cst_20 {dimension_numbers = #tpu.dot_dimension_numbers<[1], [0], [0], [1], [0, 0, 1, 1], [], []>} : vector<32x16xf32>, vector<16x16xf32>, vector<32x16xf32> -> vector<32x16xf32>
    %24 = vector.broadcast %22 : vector<32x1xf32> to vector<32x16xf32>
    %25 = arith.mulf %23, %24 : vector<32x16xf32>
    %c0_21 = arith.constant 0 : index
    %c0_22 = arith.constant 0 : index
    %c0_23 = arith.constant 0 : index
    %26 = vector.load %arg9[%c0_21, %c0_22, %c0_23] : memref<2x16x32xf32, #tpu.memory_space<vmem>>, vector<1x16x32xf32>
    %27 = vector.shape_cast %26 : vector<1x16x32xf32> to vector<16x32xf32>
    %cst_24 = arith.constant dense<0.000000e+00> : vector<32x32xf32>
    %28 = tpu.matmul %25, %27, %cst_24 {dimension_numbers = #tpu.dot_dimension_numbers<[1], [0], [0], [1], [0, 0, 1, 1], [], []>} : vector<32x16xf32>, vector<16x32xf32>, vector<32x32xf32> -> vector<32x32xf32>
    %29 = arith.addf %3, %28 : vector<32x32xf32>
    %c1 = arith.constant 1 : index
    %c0_25 = arith.constant 0 : index
    %c0_26 = arith.constant 0 : index
    %30 = vector.load %arg6[%c1, %c0_25, %c0_26] : memref<2x32x16xf32, #tpu.memory_space<vmem>>, vector<1x32x16xf32>
    %31 = vector.shape_cast %30 : vector<1x32x16xf32> to vector<32x16xf32>
    %cst_27 = arith.constant dense<0.000000e+00> : vector<32x16xf32>
    %32 = tpu.matmul %0, %31, %cst_27 {dimension_numbers = #tpu.dot_dimension_numbers<[1], [0], [0], [1], [0, 0, 1, 1], [], []>} : vector<32x32xf32>, vector<32x16xf32>, vector<32x16xf32> -> vector<32x16xf32>
    %c1_28 = arith.constant 1 : index
    %c0_29 = arith.constant 0 : index
    %c0_30 = arith.constant 0 : index
    %33 = vector.load %arg7[%c1_28, %c0_29, %c0_30] : memref<2x32x16xf32, #tpu.memory_space<vmem>>, vector<1x32x16xf32>
    %34 = vector.shape_cast %33 : vector<1x32x16xf32> to vector<32x16xf32>
    %cst_31 = arith.constant dense<0.000000e+00> : vector<16x16xf32>
    %35 = tpu.matmul %1, %34, %cst_31 {dimension_numbers = #tpu.dot_dimension_numbers<[1], [0], [0], [1], [0, 0, 1, 1], [], []>} : vector<16x32xf32>, vector<32x16xf32>, vector<16x16xf32> -> vector<16x16xf32>
    %c1_32 = arith.constant 1 : index
    %c0_33 = arith.constant 0 : index
    %c0_34 = arith.constant 0 : index
    %36 = vector.load %arg8[%c1_32, %c0_33, %c0_34] : memref<2x32x16xf32, #tpu.memory_space<vmem>>, vector<1x32x16xf32>
    %37 = vector.shape_cast %36 : vector<1x32x16xf32> to vector<32x16xf32>
    %cst_35 = arith.constant dense<0.000000e+00> : vector<16x16xf32>
    %38 = tpu.matmul %1, %37, %cst_35 {dimension_numbers = #tpu.dot_dimension_numbers<[1], [0], [0], [1], [0, 0, 1, 1], [], []>} : vector<16x32xf32>, vector<32x16xf32>, vector<16x16xf32> -> vector<16x16xf32>
    %cst_36 = arith.constant dense<0.000000e+00> : vector<32x16xf32>
    %39 = tpu.matmul %32, %35, %cst_36 {dimension_numbers = #tpu.dot_dimension_numbers<[1], [1], [0], [0], [0, 0, 1, 0], [], []>} : vector<32x16xf32>, vector<16x16xf32>, vector<32x16xf32> -> vector<32x16xf32>
    %40 = arith.addf %39, %2 : vector<32x16xf32>
    %cst_37 = arith.constant dense<0xFF800000> : vector<32xf32>
    %41 = vector.multi_reduction <maximumf>, %40, %cst_37 [1] : vector<32x16xf32> to vector<32xf32>
    %42 = vector.shape_cast %41 : vector<32xf32> to vector<32x1xf32>
    %43 = vector.broadcast %42 : vector<32x1xf32> to vector<32x16xf32>
    %44 = arith.subf %40, %43 : vector<32x16xf32>
    %45 = math.exp %44 : vector<32x16xf32>
    %cst_38 = arith.constant dense<0.000000e+00> : vector<32xf32>
    %46 = vector.multi_reduction <add>, %45, %cst_38 [1] : vector<32x16xf32> to vector<32xf32>
    %47 = vector.shape_cast %46 : vector<32xf32> to vector<32x1xf32>
    %48 = tpu.reciprocal %47 {approx = true} : vector<32x1xf32> -> vector<32x1xf32>
    %cst_39 = arith.constant dense<0.000000e+00> : vector<32x16xf32>
    %49 = tpu.matmul %45, %38, %cst_39 {dimension_numbers = #tpu.dot_dimension_numbers<[1], [0], [0], [1], [0, 0, 1, 1], [], []>} : vector<32x16xf32>, vector<16x16xf32>, vector<32x16xf32> -> vector<32x16xf32>
    %50 = vector.broadcast %48 : vector<32x1xf32> to vector<32x16xf32>
    %51 = arith.mulf %49, %50 : vector<32x16xf32>
    %c1_40 = arith.constant 1 : index
    %c0_41 = arith.constant 0 : index
    %c0_42 = arith.constant 0 : index
    %52 = vector.load %arg9[%c1_40, %c0_41, %c0_42] : memref<2x16x32xf32, #tpu.memory_space<vmem>>, vector<1x16x32xf32>
    %53 = vector.shape_cast %52 : vector<1x16x32xf32> to vector<16x32xf32>
    %cst_43 = arith.constant dense<0.000000e+00> : vector<32x32xf32>
    %54 = tpu.matmul %51, %53, %cst_43 {dimension_numbers = #tpu.dot_dimension_numbers<[1], [0], [0], [1], [0, 0, 1, 1], [], []>} : vector<32x16xf32>, vector<16x32xf32>, vector<32x32xf32> -> vector<32x32xf32>
    %55 = arith.addf %29, %54 : vector<32x32xf32>
    %56 = arith.addf %55, %0 : vector<32x32xf32>
    %c0_44 = arith.constant 0 : index
    %c0_45 = arith.constant 0 : index
    %57 = vector.load %arg14[%c0_44, %c0_45] : memref<1x32xf32, #tpu.memory_space<vmem>>, vector<1x32xf32>
    %c0_46 = arith.constant 0 : index
    %c0_47 = arith.constant 0 : index
    %58 = vector.load %arg15[%c0_46, %c0_47] : memref<1x32xf32, #tpu.memory_space<vmem>>, vector<1x32xf32>
    %cst_48 = arith.constant dense<0.000000e+00> : vector<32xf32>
    %59 = vector.multi_reduction <add>, %56, %cst_48 [1] : vector<32x32xf32> to vector<32xf32>
    %60 = vector.shape_cast %59 : vector<32xf32> to vector<32x1xf32>
    %cst_49 = arith.constant 3.200000e+01 : f32
    %61 = vector.broadcast %cst_49 : f32 to vector<32x1xf32>
    %62 = arith.divf %60, %61 : vector<32x1xf32>
    %63 = vector.broadcast %62 : vector<32x1xf32> to vector<32x32xf32>
    %64 = arith.subf %56, %63 : vector<32x32xf32>
    %65 = arith.mulf %64, %64 : vector<32x32xf32>
    %cst_50 = arith.constant dense<0.000000e+00> : vector<32xf32>
    %66 = vector.multi_reduction <add>, %65, %cst_50 [1] : vector<32x32xf32> to vector<32xf32>
    %67 = vector.shape_cast %66 : vector<32xf32> to vector<32x1xf32>
    %cst_51 = arith.constant 3.200000e+01 : f32
    %68 = vector.broadcast %cst_51 : f32 to vector<32x1xf32>
    %69 = arith.divf %67, %68 : vector<32x1xf32>
    %70 = vector.broadcast %62 : vector<32x1xf32> to vector<32x32xf32>
    %71 = arith.subf %56, %70 : vector<32x32xf32>
    %cst_52 = arith.constant 9.99999974E-6 : f32
    %72 = vector.broadcast %cst_52 : f32 to vector<32x1xf32>
    %73 = arith.addf %69, %72 : vector<32x1xf32>
    %74 = math.rsqrt %73 : vector<32x1xf32>
    %75 = vector.broadcast %74 : vector<32x1xf32> to vector<32x32xf32>
    %76 = arith.mulf %71, %75 : vector<32x32xf32>
    %77 = vector.broadcast %57 : vector<1x32xf32> to vector<32x32xf32>
    %78 = arith.mulf %76, %77 : vector<32x32xf32>
    %79 = vector.broadcast %58 : vector<1x32xf32> to vector<32x32xf32>
    %80 = arith.addf %78, %79 : vector<32x32xf32>
    %c0_53 = arith.constant 0 : index
    %c0_54 = arith.constant 0 : index
    %81 = vector.load %arg10[%c0_53, %c0_54] : memref<32x32xf32, #tpu.memory_space<vmem>>, vector<32x32xf32>
    %cst_55 = arith.constant dense<0.000000e+00> : vector<32x32xf32>
    %82 = tpu.matmul %80, %81, %cst_55 {dimension_numbers = #tpu.dot_dimension_numbers<[1], [0], [0], [1], [0, 0, 1, 1], [], []>} : vector<32x32xf32>, vector<32x32xf32>, vector<32x32xf32> -> vector<32x32xf32>
    %c0_56 = arith.constant 0 : index
    %c0_57 = arith.constant 0 : index
    %83 = vector.load %arg11[%c0_56, %c0_57] : memref<1x32xf32, #tpu.memory_space<vmem>>, vector<1x32xf32>
    %84 = vector.broadcast %83 : vector<1x32xf32> to vector<32x32xf32>
    %85 = arith.addf %82, %84 : vector<32x32xf32>
    %cst_58 = arith.constant 0.000000e+00 : f32
    %86 = vector.broadcast %cst_58 : f32 to vector<32x32xf32>
    %87 = arith.maximumf %85, %86 : vector<32x32xf32>
    %c0_59 = arith.constant 0 : index
    %c0_60 = arith.constant 0 : index
    %88 = vector.load %arg12[%c0_59, %c0_60] : memref<32x32xf32, #tpu.memory_space<vmem>>, vector<32x32xf32>
    %cst_61 = arith.constant dense<0.000000e+00> : vector<32x32xf32>
    %89 = tpu.matmul %87, %88, %cst_61 {dimension_numbers = #tpu.dot_dimension_numbers<[1], [0], [0], [1], [0, 0, 1, 1], [], []>} : vector<32x32xf32>, vector<32x32xf32>, vector<32x32xf32> -> vector<32x32xf32>
    %c0_62 = arith.constant 0 : index
    %c0_63 = arith.constant 0 : index
    %90 = vector.load %arg13[%c0_62, %c0_63] : memref<1x32xf32, #tpu.memory_space<vmem>>, vector<1x32xf32>
    %91 = vector.broadcast %90 : vector<1x32xf32> to vector<32x32xf32>
    %92 = arith.addf %89, %91 : vector<32x32xf32>
    %93 = arith.addf %92, %80 : vector<32x32xf32>
    %c0_64 = arith.constant 0 : index
    %c0_65 = arith.constant 0 : index
    %94 = vector.load %arg16[%c0_64, %c0_65] : memref<1x32xf32, #tpu.memory_space<vmem>>, vector<1x32xf32>
    %c0_66 = arith.constant 0 : index
    %c0_67 = arith.constant 0 : index
    %95 = vector.load %arg17[%c0_66, %c0_67] : memref<1x32xf32, #tpu.memory_space<vmem>>, vector<1x32xf32>
    %cst_68 = arith.constant dense<0.000000e+00> : vector<32xf32>
    %96 = vector.multi_reduction <add>, %93, %cst_68 [1] : vector<32x32xf32> to vector<32xf32>
    %97 = vector.shape_cast %96 : vector<32xf32> to vector<32x1xf32>
    %cst_69 = arith.constant 3.200000e+01 : f32
    %98 = vector.broadcast %cst_69 : f32 to vector<32x1xf32>
    %99 = arith.divf %97, %98 : vector<32x1xf32>
    %100 = vector.broadcast %99 : vector<32x1xf32> to vector<32x32xf32>
    %101 = arith.subf %93, %100 : vector<32x32xf32>
    %102 = arith.mulf %101, %101 : vector<32x32xf32>
    %cst_70 = arith.constant dense<0.000000e+00> : vector<32xf32>
    %103 = vector.multi_reduction <add>, %102, %cst_70 [1] : vector<32x32xf32> to vector<32xf32>
    %104 = vector.shape_cast %103 : vector<32xf32> to vector<32x1xf32>
    %cst_71 = arith.constant 3.200000e+01 : f32
    %105 = vector.broadcast %cst_71 : f32 to vector<32x1xf32>
    %106 = arith.divf %104, %105 : vector<32x1xf32>
    %107 = vector.broadcast %99 : vector<32x1xf32> to vector<32x32xf32>
    %108 = arith.subf %93, %107 : vector<32x32xf32>
    %cst_72 = arith.constant 9.99999974E-6 : f32
    %109 = vector.broadcast %cst_72 : f32 to vector<32x1xf32>
    %110 = arith.addf %106, %109 : vector<32x1xf32>
    %111 = math.rsqrt %110 : vector<32x1xf32>
    %112 = vector.broadcast %111 : vector<32x1xf32> to vector<32x32xf32>
    %113 = arith.mulf %108, %112 : vector<32x32xf32>
    %114 = vector.broadcast %94 : vector<1x32xf32> to vector<32x32xf32>
    %115 = arith.mulf %113, %114 : vector<32x32xf32>
    %116 = vector.broadcast %95 : vector<1x32xf32> to vector<32x32xf32>
    %117 = arith.addf %115, %116 : vector<32x32xf32>
    %c0_73 = arith.constant 0 : index
    %c0_74 = arith.constant 0 : index
    %118 = vector.load %arg3[%c0_73, %c0_74] : memref<32x32xf32, #tpu.memory_space<vmem>>, vector<32x32xf32>
    %119 = arith.mulf %117, %118 : vector<32x32xf32>
    %cst_75 = arith.constant dense<0.000000e+00> : vector<32xf32>
    %120 = vector.multi_reduction <add>, %119, %cst_75 [1] : vector<32x32xf32> to vector<32xf32>
    %121 = vector.shape_cast %120 : vector<32xf32> to vector<32x1xf32>
    %c0_76 = arith.constant 0 : index
    %c0_77 = arith.constant 0 : index
    %122 = vector.load %arg4[%c0_76, %c0_77] : memref<32x32xf32, #tpu.memory_space<vmem>>, vector<32x32xf32>
    %123 = arith.mulf %117, %122 : vector<32x32xf32>
    %cst_78 = arith.constant dense<0.000000e+00> : vector<32xf32>
    %124 = vector.multi_reduction <add>, %123, %cst_78 [1] : vector<32x32xf32> to vector<32xf32>
    %125 = vector.shape_cast %124 : vector<32xf32> to vector<32x1xf32>
    %126 = tpu.concatenate %121, %125 in 1 : vector<32x1xf32>, vector<32x1xf32> -> vector<32x2xf32>
    %c0_79 = arith.constant 0 : index
    %c0_80 = arith.constant 0 : index
    %127 = vector.load %arg18[%c0_79, %c0_80] : memref<32x2xf32, #tpu.memory_space<vmem>>, vector<32x2xf32>
    tpu.vector_store %arg18[%c0_79, %c0_80], %126 {strides = array<i32>} : memref<32x2xf32, #tpu.memory_space<vmem>>, vector<32x2xf32>,
    return
  }
  func.func @transform_0(%arg0: i32) -> (i32, i32) {
    %c0_i32 = arith.constant 0 : i32
    %c0_i32_0 = arith.constant 0 : i32
    return %arg0, %c0_i32 : i32, i32
  }
  func.func @transform_1(%arg0: i32) -> (i32, i32) {
    %c0_i32 = arith.constant 0 : i32
    %c0_i32_0 = arith.constant 0 : i32
    return %arg0, %c0_i32 : i32, i32
  }
  func.func @transform_2(%arg0: i32) -> (i32, i32) {
    %c0_i32 = arith.constant 0 : i32
    %c0_i32_0 = arith.constant 0 : i32
    return %arg0, %c0_i32 : i32, i32
  }
  func.func @transform_3(%arg0: i32) -> (i32, i32) {
    %c0_i32 = arith.constant 0 : i32
    %c0_i32_0 = arith.constant 0 : i32
    return %arg0, %c0_i32 : i32, i32
  }
  func.func @transform_4(%arg0: i32) -> (i32, i32) {
    %c0_i32 = arith.constant 0 : i32
    %c0_i32_0 = arith.constant 0 : i32
    %c0_i32_1 = arith.constant 0 : i32
    return %c0_i32, %c0_i32_0 : i32, i32
  }
  func.func @transform_5(%arg0: i32) -> (i32, i32, i32) {
    %c0_i32 = arith.constant 0 : i32
    %c0_i32_0 = arith.constant 0 : i32
    %c0_i32_1 = arith.constant 0 : i32
    %c0_i32_2 = arith.constant 0 : i32
    return %c0_i32, %c0_i32_0, %c0_i32_1 : i32, i32, i32
  }
  func.func @transform_6(%arg0: i32) -> (i32, i32, i32) {
    %c0_i32 = arith.constant 0 : i32
    %c0_i32_0 = arith.constant 0 : i32
    %c0_i32_1 = arith.constant 0 : i32
    %c0_i32_2 = arith.constant 0 : i32
    return %c0_i32, %c0_i32_0, %c0_i32_1 : i32, i32, i32
  }
  func.func @transform_7(%arg0: i32) -> (i32, i32, i32) {
    %c0_i32 = arith.constant 0 : i32
    %c0_i32_0 = arith.constant 0 : i32
    %c0_i32_1 = arith.constant 0 : i32
    %c0_i32_2 = arith.constant 0 : i32
    return %c0_i32, %c0_i32_0, %c0_i32_1 : i32, i32, i32
  }
  func.func @transform_8(%arg0: i32) -> (i32, i32, i32) {
    %c0_i32 = arith.constant 0 : i32
    %c0_i32_0 = arith.constant 0 : i32
    %c0_i32_1 = arith.constant 0 : i32
    %c0_i32_2 = arith.constant 0 : i32
    return %c0_i32, %c0_i32_0, %c0_i32_1 : i32, i32, i32
  }
  func.func @transform_9(%arg0: i32) -> (i32, i32) {
    %c0_i32 = arith.constant 0 : i32
    %c0_i32_0 = arith.constant 0 : i32
    %c0_i32_1 = arith.constant 0 : i32
    return %c0_i32, %c0_i32_0 : i32, i32
  }
  func.func @transform_10(%arg0: i32) -> (i32, i32) {
    %c0_i32 = arith.constant 0 : i32
    %c0_i32_0 = arith.constant 0 : i32
    %c0_i32_1 = arith.constant 0 : i32
    return %c0_i32, %c0_i32_0 : i32, i32
  }
  func.func @transform_11(%arg0: i32) -> (i32, i32) {
    %c0_i32 = arith.constant 0 : i32
    %c0_i32_0 = arith.constant 0 : i32
    %c0_i32_1 = arith.constant 0 : i32
    return %c0_i32, %c0_i32_0 : i32, i32
  }
  func.func @transform_12(%arg0: i32) -> (i32, i32) {
    %c0_i32 = arith.constant 0 : i32
    %c0_i32_0 = arith.constant 0 : i32
    %c0_i32_1 = arith.constant 0 : i32
    return %c0_i32, %c0_i32_0 : i32, i32
  }
  func.func @transform_13(%arg0: i32) -> (i32, i32) {
    %c0_i32 = arith.constant 0 : i32
    %c0_i32_0 = arith.constant 0 : i32
    %c0_i32_1 = arith.constant 0 : i32
    return %c0_i32, %c0_i32_0 : i32, i32
  }
  func.func @transform_14(%arg0: i32) -> (i32, i32) {
    %c0_i32 = arith.constant 0 : i32
    %c0_i32_0 = arith.constant 0 : i32
    %c0_i32_1 = arith.constant 0 : i32
    return %c0_i32, %c0_i32_0 : i32, i32
  }
  func.func @transform_15(%arg0: i32) -> (i32, i32) {
    %c0_i32 = arith.constant 0 : i32
    %c0_i32_0 = arith.constant 0 : i32
    %c0_i32_1 = arith.constant 0 : i32
    return %c0_i32, %c0_i32_0 : i32, i32
  }
  func.func @transform_16(%arg0: i32) -> (i32, i32) {
    %c0_i32 = arith.constant 0 : i32
    %c0_i32_0 = arith.constant 0 : i32
    %c0_i32_1 = arith.constant 0 : i32
    return %c0_i32, %c0_i32_0 : i32, i32
  }
  func.func @transform_17(%arg0: i32) -> (i32, i32) {
    %c0_i32 = arith.constant 0 : i32
    %c0_i32_0 = arith.constant 0 : i32
    return %arg0, %c0_i32 : i32, i32
  }
}

</mosaic_0001>

<llo_original>
// kernel: tpu_custom_call.1
$region0: #{tpu_custom_call.1}
  #allocation0 [shape = 'u32[]', space=smem, size = 0x4, offset = 0x4, fixed_abs, tag = 'smem constant byte address 0x4 - core index']
  #allocation1 [shape = 'u32[144,128]{1,0:T(1,128)}', space=vmem, size = 0x12000, scoped, tag = 'internal scratch']
  %s0 = inlined_call_operand.vmem [shape: f32[64,32], index: 0, kind: input, shape index: {}]
  %s1 = inlined_call_operand.vmem [shape: f32[32,32], index: 1, kind: input, shape index: {}]
  %s2 = inlined_call_operand.vmem [shape: f32[64,32], index: 2, kind: input, shape index: {}]
  %s3 = inlined_call_operand.vmem [shape: f32[64,32], index: 3, kind: input, shape index: {}]
  %s4 = inlined_call_operand.vmem [shape: f32[32,16], index: 4, kind: input, shape index: {}]
  %s5 = inlined_call_operand.vmem [shape: f32[2,32,16], index: 5, kind: input, shape index: {}]
  %s6 = inlined_call_operand.vmem [shape: f32[2,32,16], index: 6, kind: input, shape index: {}]
  %s7 = inlined_call_operand.vmem [shape: f32[2,32,16], index: 7, kind: input, shape index: {}]
  %s8 = inlined_call_operand.vmem [shape: f32[2,16,32], index: 8, kind: input, shape index: {}]
  %s9 = inlined_call_operand.vmem [shape: f32[32,32], index: 9, kind: input, shape index: {}]
  %s10 = inlined_call_operand.vmem [shape: f32[1,32], index: 10, kind: input, shape index: {}]
  %s11 = inlined_call_operand.vmem [shape: f32[32,32], index: 11, kind: input, shape index: {}]
  %s12 = inlined_call_operand.vmem [shape: f32[1,32], index: 12, kind: input, shape index: {}]
  %s13 = inlined_call_operand.vmem [shape: f32[1,32], index: 13, kind: input, shape index: {}]
  %s14 = inlined_call_operand.vmem [shape: f32[1,32], index: 14, kind: input, shape index: {}]
  %s15 = inlined_call_operand.vmem [shape: f32[1,32], index: 15, kind: input, shape index: {}]
  %s16 = inlined_call_operand.vmem [shape: f32[1,32], index: 16, kind: input, shape index: {}]
  %s17 = inlined_call_operand.vmem [shape: f32[64,2], index: 17, kind: output, shape index: {}]
  %s18 = sld [smem:[#allocation0]]
  $region101: #{tpu_custom_call.1} parent=0
    _
  %s20 = ssub.s32 1, %s18
  %s21 = scalar_select 0, %s20, %s18
  loop: start=0, step=1, limit=4
  $region2: #{tpu_custom_call.1} parent=0 // loop_pre_header
    _
  $region3: #{tpu_custom_call.1} parent=0 // loop_header
    %s23 = sphi 0, %s27
    %p24 = scmp.ge.s32.totalorder %s23, 4
    %s33 = sphi 0, %s35
    %s36 = sphi 0, %s33
    %s37 = sphi 0, %s36
    %s53 = sphi 0, %s37
    %s59 = sphi 0, %s61
    %s62 = sphi 0, %s59
    %s63 = sphi 0, %s62
    %s79 = sphi 0, %s63
    %s85 = sphi 0, %s87
    %s88 = sphi 0, %s85
    %s89 = sphi 0, %s88
    %s105 = sphi 0, %s89
    %s111 = sphi 0, %s113
    %s114 = sphi 0, %s111
    %s115 = sphi 0, %s114
    %s131 = sphi 0, %s115
    %s135 = sphi 0, %s135
    %s137 = sphi 0, %s135
    %s138 = sphi 0, %s137
    %s152 = sphi 0, %s138
    %s156 = sphi 0, %s156
    %s158 = sphi 0, %s156
    %s159 = sphi 0, %s158
    %s173 = sphi 0, %s159
    %s177 = sphi 0, %s177
    %s179 = sphi 0, %s177
    %s180 = sphi 0, %s179
    %s194 = sphi 0, %s180
    %s198 = sphi 0, %s198
    %s200 = sphi 0, %s198
    %s201 = sphi 0, %s200
    %s215 = sphi 0, %s201
    %s219 = sphi 0, %s219
    %s221 = sphi 0, %s219
    %s222 = sphi 0, %s221
    %s236 = sphi 0, %s222
    %s240 = sphi 0, %s240
    %s242 = sphi 0, %s240
    %s243 = sphi 0, %s242
    %s257 = sphi 0, %s243
    %s261 = sphi 0, %s261
    %s263 = sphi 0, %s261
    %s264 = sphi 0, %s263
    %s278 = sphi 0, %s264
    %s282 = sphi 0, %s282
    %s284 = sphi 0, %s282
    %s285 = sphi 0, %s284
    %s299 = sphi 0, %s285
    %s303 = sphi 0, %s303
    %s305 = sphi 0, %s303
    %s306 = sphi 0, %s305
    %s320 = sphi 0, %s306
    %s324 = sphi 0, %s324
    %s326 = sphi 0, %s324
    %s327 = sphi 0, %s326
    %s341 = sphi 0, %s327
    %s345 = sphi 0, %s345
    %s347 = sphi 0, %s345
    %s348 = sphi 0, %s347
    %s362 = sphi 0, %s348
    %s366 = sphi 0, %s366
    %s368 = sphi 0, %s366
    %s369 = sphi 0, %s368
    %s383 = sphi 0, %s369
    %s387 = sphi 0, %s387
    %s389 = sphi 0, %s387
    %s390 = sphi 0, %s389
    %s404 = sphi 0, %s390
    %s410 = sphi 0, %s412
    %s413 = sphi 0, %s410
    %s414 = sphi 0, %s413
    %s430 = sphi 0, %s414
  $region4: #{tpu_custom_call.1} parent=0 // loop_header_branch
    %26 = sbr.rel (%p24) target = $region8
  $region5: #{tpu_custom_call.1} parent=0 // loop_body
    %s28 = ssub.s32 %s23, 1
    %s29 = ssub.s32 %s23, 2
    %s30 = sadd.s32 %s23, 1
    %s31 = ssub.s32 %s23, %s30
    %p32 = scmp.eq.s32.totalorder %s31, 0
    %s34 = sadd.s32 %s33, 1
    %s35 = scalar_select %p32, %s33, %s34
    %p38 = pneg %p32
    %p39 = scmp.eq.s32.totalorder %s23, 1
    %p40 = por %p38, %p39
    %p41 = scmp.ne.s32.totalorder %s33, %s36
    %p42 = scmp.eq.s32.totalorder %s23, 0
    %p43 = por %p41, %p42
    %p44 = scmp.ne.s32.totalorder %s33, %s36
    %p45 = scmp.eq.s32.totalorder %s28, 1
    %p46 = por %p44, %p45
    %p47 = scmp.ne.s32.totalorder %s36, %s37
    %p48 = scmp.eq.s32.totalorder %s28, 0
    %p49 = por %p47, %p48
    %p50 = scmp.ne.s32.totalorder %s36, %s37
    %p51 = scmp.eq.s32.totalorder %s29, 1
    %p52 = por %p50, %p51
    %p54 = scmp.ne.s32.totalorder %s37, %s53
    %p55 = scmp.eq.s32.totalorder %s29, 0
    %p56 = por %p54, %p55
    %s57 = ssub.s32 %s23, %s30
    %p58 = scmp.eq.s32.totalorder %s57, 0
    %s60 = sadd.s32 %s59, 1
    %s61 = scalar_select %p58, %s59, %s60
    %p64 = pneg %p58
    %p65 = scmp.eq.s32.totalorder %s23, 1
    %p66 = por %p64, %p65
    %p67 = scmp.ne.s32.totalorder %s59, %s62
    %p68 = scmp.eq.s32.totalorder %s23, 0
    %p69 = por %p67, %p68
    %p70 = scmp.ne.s32.totalorder %s59, %s62
    %p71 = scmp.eq.s32.totalorder %s28, 1
    %p72 = por %p70, %p71
    %p73 = scmp.ne.s32.totalorder %s62, %s63
    %p74 = scmp.eq.s32.totalorder %s28, 0
    %p75 = por %p73, %p74
    %p76 = scmp.ne.s32.totalorder %s62, %s63
    %p77 = scmp.eq.s32.totalorder %s29, 1
    %p78 = por %p76, %p77
    %p80 = scmp.ne.s32.totalorder %s63, %s79
    %p81 = scmp.eq.s32.totalorder %s29, 0
    %p82 = por %p80, %p81
    %s83 = ssub.s32 %s23, %s30
    %p84 = scmp.eq.s32.totalorder %s83, 0
    %s86 = sadd.s32 %s85, 1
    %s87 = scalar_select %p84, %s85, %s86
    %p90 = pneg %p84
    %p91 = scmp.eq.s32.totalorder %s23, 1
    %p92 = por %p90, %p91
    %p93 = scmp.ne.s32.totalorder %s85, %s88
    %p94 = scmp.eq.s32.totalorder %s23, 0
    %p95 = por %p93, %p94
    %p96 = scmp.ne.s32.totalorder %s85, %s88
    %p97 = scmp.eq.s32.totalorder %s28, 1
    %p98 = por %p96, %p97
    %p99 = scmp.ne.s32.totalorder %s88, %s89
    %p100 = scmp.eq.s32.totalorder %s28, 0
    %p101 = por %p99, %p100
    %p102 = scmp.ne.s32.totalorder %s88, %s89
    %p103 = scmp.eq.s32.totalorder %s29, 1
    %p104 = por %p102, %p103
    %p106 = scmp.ne.s32.totalorder %s89, %s105
    %p107 = scmp.eq.s32.totalorder %s29, 0
    %p108 = por %p106, %p107
    %s109 = ssub.s32 %s23, %s30
    %p110 = scmp.eq.s32.totalorder %s109, 0
    %s112 = sadd.s32 %s111, 1
    %s113 = scalar_select %p110, %s111, %s112
    %p116 = pneg %p110
    %p117 = scmp.eq.s32.totalorder %s23, 1
    %p118 = por %p116, %p117
    %p119 = scmp.ne.s32.totalorder %s111, %s114
    %p120 = scmp.eq.s32.totalorder %s23, 0
    %p121 = por %p119, %p120
    %p122 = scmp.ne.s32.totalorder %s111, %s114
    %p123 = scmp.eq.s32.totalorder %s28, 1
    %p124 = por %p122, %p123
    %p125 = scmp.ne.s32.totalorder %s114, %s115
    %p126 = scmp.eq.s32.totalorder %s28, 0
    %p127 = por %p125, %p126
    %p128 = scmp.ne.s32.totalorder %s114, %s115
    %p129 = scmp.eq.s32.totalorder %s29, 1
    %p130 = por %p128, %p129
    %p132 = scmp.ne.s32.totalorder %s115, %s131
    %p133 = scmp.eq.s32.totalorder %s29, 0
    %p134 = por %p132, %p133
    %s136 = sadd.s32 %s135, 1
    %p139 = scmp.eq.s32.totalorder %s23, 1
    %p140 = scmp.ne.s32.totalorder %s135, %s137
    %p141 = scmp.eq.s32.totalorder %s23, 0
    %p142 = por %p140, %p141
    %p143 = scmp.ne.s32.totalorder %s135, %s137
    %p144 = scmp.eq.s32.totalorder %s28, 1
    %p145 = por %p143, %p144
    %p146 = scmp.ne.s32.totalorder %s137, %s138
    %p147 = scmp.eq.s32.totalorder %s28, 0
    %p148 = por %p146, %p147
    %p149 = scmp.ne.s32.totalorder %s137, %s138
    %p150 = scmp.eq.s32.totalorder %s29, 1
    %p151 = por %p149, %p150
    %p153 = scmp.ne.s32.totalorder %s138, %s152
    %p154 = scmp.eq.s32.totalorder %s29, 0
    %p155 = por %p153, %p154
    %s157 = sadd.s32 %s156, 1
    %p160 = scmp.eq.s32.totalorder %s23, 1
    %p161 = scmp.ne.s32.totalorder %s156, %s158
    %p162 = scmp.eq.s32.totalorder %s23, 0
    %p163 = por %p161, %p162
    %p164 = scmp.ne.s32.totalorder %s156, %s158
    %p165 = scmp.eq.s32.totalorder %s28, 1
    %p166 = por %p164, %p165
    %p167 = scmp.ne.s32.totalorder %s158, %s159
    %p168 = scmp.eq.s32.totalorder %s28, 0
    %p169 = por %p167, %p168
    %p170 = scmp.ne.s32.totalorder %s158, %s159
    %p171 = scmp.eq.s32.totalorder %s29, 1
    %p172 = por %p170, %p171
    %p174 = scmp.ne.s32.totalorder %s159, %s173
    %p175 = scmp.eq.s32.totalorder %s29, 0
    %p176 = por %p174, %p175
    %s178 = sadd.s32 %s177, 1
    %p181 = scmp.eq.s32.totalorder %s23, 1
    %p182 = scmp.ne.s32.totalorder %s177, %s179
    %p183 = scmp.eq.s32.totalorder %s23, 0
    %p184 = por %p182, %p183
    %p185 = scmp.ne.s32.totalorder %s177, %s179
    %p186 = scmp.eq.s32.totalorder %s28, 1
    %p187 = por %p185, %p186
    %p188 = scmp.ne.s32.totalorder %s179, %s180
    %p189 = scmp.eq.s32.totalorder %s28, 0
    %p190 = por %p188, %p189
    %p191 = scmp.ne.s32.totalorder %s179, %s180
    %p192 = scmp.eq.s32.totalorder %s29, 1
    %p193 = por %p191, %p192
    %p195 = scmp.ne.s32.totalorder %s180, %s194
    %p196 = scmp.eq.s32.totalorder %s29, 0
    %p197 = por %p195, %p196
    %s199 = sadd.s32 %s198, 1
    %p202 = scmp.eq.s32.totalorder %s23, 1
    %p203 = scmp.ne.s32.totalorder %s198, %s200
    %p204 = scmp.eq.s32.totalorder %s23, 0
    %p205 = por %p203, %p204
    %p206 = scmp.ne.s32.totalorder %s198, %s200
    %p207 = scmp.eq.s32.totalorder %s28, 1
    %p208 = por %p206, %p207
    %p209 = scmp.ne.s32.totalorder %s200, %s201
    %p210 = scmp.eq.s32.totalorder %s28, 0
    %p211 = por %p209, %p210
    %p212 = scmp.ne.s32.totalorder %s200, %s201
    %p213 = scmp.eq.s32.totalorder %s29, 1
    %p214 = por %p212, %p213
    %p216 = scmp.ne.s32.totalorder %s201, %s215
    %p217 = scmp.eq.s32.totalorder %s29, 0
    %p218 = por %p216, %p217
    %s220 = sadd.s32 %s219, 1
    %p223 = scmp.eq.s32.totalorder %s23, 1
    %p224 = scmp.ne.s32.totalorder %s219, %s221
    %p225 = scmp.eq.s32.totalorder %s23, 0
    %p226 = por %p224, %p225
    %p227 = scmp.ne.s32.totalorder %s219, %s221
    %p228 = scmp.eq.s32.totalorder %s28, 1
    %p229 = por %p227, %p228
    %p230 = scmp.ne.s32.totalorder %s221, %s222
    %p231 = scmp.eq.s32.totalorder %s28, 0
    %p232 = por %p230, %p231
    %p233 = scmp.ne.s32.totalorder %s221, %s222
    %p234 = scmp.eq.s32.totalorder %s29, 1
    %p235 = por %p233, %p234
    %p237 = scmp.ne.s32.totalorder %s222, %s236
    %p238 = scmp.eq.s32.totalorder %s29, 0
    %p239 = por %p237, %p238
    %s241 = sadd.s32 %s240, 1
    %p244 = scmp.eq.s32.totalorder %s23, 1
    %p245 = scmp.ne.s32.totalorder %s240, %s242
    %p246 = scmp.eq.s32.totalorder %s23, 0
    %p247 = por %p245, %p246
    %p248 = scmp.ne.s32.totalorder %s240, %s242
    %p249 = scmp.eq.s32.totalorder %s28, 1
    %p250 = por %p248, %p249
    %p251 = scmp.ne.s32.totalorder %s242, %s243
    %p252 = scmp.eq.s32.totalorder %s28, 0
    %p253 = por %p251, %p252
    %p254 = scmp.ne.s32.totalorder %s242, %s243
    %p255 = scmp.eq.s32.totalorder %s29, 1
    %p256 = por %p254, %p255
    %p258 = scmp.ne.s32.totalorder %s243, %s257
    %p259 = scmp.eq.s32.totalorder %s29, 0
    %p260 = por %p258, %p259
    %s262 = sadd.s32 %s261, 1
    %p265 = scmp.eq.s32.totalorder %s23, 1
    %p266 = scmp.ne.s32.totalorder %s261, %s263
    %p267 = scmp.eq.s32.totalorder %s23, 0
    %p268 = por %p266, %p267
    %p269 = scmp.ne.s32.totalorder %s261, %s263
    %p270 = scmp.eq.s32.totalorder %s28, 1
    %p271 = por %p269, %p270
    %p272 = scmp.ne.s32.totalorder %s263, %s264
    %p273 = scmp.eq.s32.totalorder %s28, 0
    %p274 = por %p272, %p273
    %p275 = scmp.ne.s32.totalorder %s263, %s264
    %p276 = scmp.eq.s32.totalorder %s29, 1
    %p277 = por %p275, %p276
    %p279 = scmp.ne.s32.totalorder %s264, %s278
    %p280 = scmp.eq.s32.totalorder %s29, 0
    %p281 = por %p279, %p280
    %s283 = sadd.s32 %s282, 1
    %p286 = scmp.eq.s32.totalorder %s23, 1
    %p287 = scmp.ne.s32.totalorder %s282, %s284
    %p288 = scmp.eq.s32.totalorder %s23, 0
    %p289 = por %p287, %p288
    %p290 = scmp.ne.s32.totalorder %s282, %s284
    %p291 = scmp.eq.s32.totalorder %s28, 1
    %p292 = por %p290, %p291
    %p293 = scmp.ne.s32.totalorder %s284, %s285
    %p294 = scmp.eq.s32.totalorder %s28, 0
    %p295 = por %p293, %p294
    %p296 = scmp.ne.s32.totalorder %s284, %s285
    %p297 = scmp.eq.s32.totalorder %s29, 1
    %p298 = por %p296, %p297
    %p300 = scmp.ne.s32.totalorder %s285, %s299
    %p301 = scmp.eq.s32.totalorder %s29, 0
    %p302 = por %p300, %p301
    %s304 = sadd.s32 %s303, 1
    %p307 = scmp.eq.s32.totalorder %s23, 1
    %p308 = scmp.ne.s32.totalorder %s303, %s305
    %p309 = scmp.eq.s32.totalorder %s23, 0
    %p310 = por %p308, %p309
    %p311 = scmp.ne.s32.totalorder %s303, %s305
    %p312 = scmp.eq.s32.totalorder %s28, 1
    %p313 = por %p311, %p312
    %p314 = scmp.ne.s32.totalorder %s305, %s306
    %p315 = scmp.eq.s32.totalorder %s28, 0
    %p316 = por %p314, %p315
    %p317 = scmp.ne.s32.totalorder %s305, %s306
    %p318 = scmp.eq.s32.totalorder %s29, 1
    %p319 = por %p317, %p318
    %p321 = scmp.ne.s32.totalorder %s306, %s320
    %p322 = scmp.eq.s32.totalorder %s29, 0
    %p323 = por %p321, %p322
    %s325 = sadd.s32 %s324, 1
    %p328 = scmp.eq.s32.totalorder %s23, 1
    %p329 = scmp.ne.s32.totalorder %s324, %s326
    %p330 = scmp.eq.s32.totalorder %s23, 0
    %p331 = por %p329, %p330
    %p332 = scmp.ne.s32.totalorder %s324, %s326
    %p333 = scmp.eq.s32.totalorder %s28, 1
    %p334 = por %p332, %p333
    %p335 = scmp.ne.s32.totalorder %s326, %s327
    %p336 = scmp.eq.s32.totalorder %s28, 0
    %p337 = por %p335, %p336
    %p338 = scmp.ne.s32.totalorder %s326, %s327
    %p339 = scmp.eq.s32.totalorder %s29, 1
    %p340 = por %p338, %p339
    %p342 = scmp.ne.s32.totalorder %s327, %s341
    %p343 = scmp.eq.s32.totalorder %s29, 0
    %p344 = por %p342, %p343
    %s346 = sadd.s32 %s345, 1
    %p349 = scmp.eq.s32.totalorder %s23, 1
    %p350 = scmp.ne.s32.totalorder %s345, %s347
    %p351 = scmp.eq.s32.totalorder %s23, 0
    %p352 = por %p350, %p351
    %p353 = scmp.ne.s32.totalorder %s345, %s347
    %p354 = scmp.eq.s32.totalorder %s28, 1
    %p355 = por %p353, %p354
    %p356 = scmp.ne.s32.totalorder %s347, %s348
    %p357 = scmp.eq.s32.totalorder %s28, 0
    %p358 = por %p356, %p357
    %p359 = scmp.ne.s32.totalorder %s347, %s348
    %p360 = scmp.eq.s32.totalorder %s29, 1
    %p361 = por %p359, %p360
    %p363 = scmp.ne.s32.totalorder %s348, %s362
    %p364 = scmp.eq.s32.totalorder %s29, 0
    %p365 = por %p363, %p364
    %s367 = sadd.s32 %s366, 1
    %p370 = scmp.eq.s32.totalorder %s23, 1
    %p371 = scmp.ne.s32.totalorder %s366, %s368
    %p372 = scmp.eq.s32.totalorder %s23, 0
    %p373 = por %p371, %p372
    %p374 = scmp.ne.s32.totalorder %s366, %s368
    %p375 = scmp.eq.s32.totalorder %s28, 1
    %p376 = por %p374, %p375
    %p377 = scmp.ne.s32.totalorder %s368, %s369
    %p378 = scmp.eq.s32.totalorder %s28, 0
    %p379 = por %p377, %p378
    %p380 = scmp.ne.s32.totalorder %s368, %s369
    %p381 = scmp.eq.s32.totalorder %s29, 1
    %p382 = por %p380, %p381
    %p384 = scmp.ne.s32.totalorder %s369, %s383
    %p385 = scmp.eq.s32.totalorder %s29, 0
    %p386 = por %p384, %p385
    %s388 = sadd.s32 %s387, 1
    %p391 = scmp.eq.s32.totalorder %s23, 1
    %p392 = scmp.ne.s32.totalorder %s387, %s389
    %p393 = scmp.eq.s32.totalorder %s23, 0
    %p394 = por %p392, %p393
    %p395 = scmp.ne.s32.totalorder %s387, %s389
    %p396 = scmp.eq.s32.totalorder %s28, 1
    %p397 = por %p395, %p396
    %p398 = scmp.ne.s32.totalorder %s389, %s390
    %p399 = scmp.eq.s32.totalorder %s28, 0
    %p400 = por %p398, %p399
    %p401 = scmp.ne.s32.totalorder %s389, %s390
    %p402 = scmp.eq.s32.totalorder %s29, 1
    %p403 = por %p401, %p402
    %p405 = scmp.ne.s32.totalorder %s390, %s404
    %p406 = scmp.eq.s32.totalorder %s29, 0
    %p407 = por %p405, %p406
    %s408 = ssub.s32 %s23, %s30
    %p409 = scmp.eq.s32.totalorder %s408, 0
    %s411 = sadd.s32 %s410, 1
    %s412 = scalar_select %p409, %s410, %s411
    %p415 = pneg %p409
    %p416 = scmp.eq.s32.totalorder %s23, 1
    %p417 = por %p415, %p416
    %p418 = scmp.ne.s32.totalorder %s410, %s413
    %p419 = scmp.eq.s32.totalorder %s23, 0
    %p420 = por %p418, %p419
    %p421 = scmp.ne.s32.totalorder %s410, %s413
    %p422 = scmp.eq.s32.totalorder %s28, 1
    %p423 = por %p421, %p422
    %p424 = scmp.ne.s32.totalorder %s413, %s414
    %p425 = scmp.eq.s32.totalorder %s28, 0
    %p426 = por %p424, %p425
    %p427 = scmp.ne.s32.totalorder %s413, %s414
    %p428 = scmp.eq.s32.totalorder %s29, 1
    %p429 = por %p427, %p428
    %p431 = scmp.ne.s32.totalorder %s414, %s430
    %p432 = scmp.eq.s32.totalorder %s29, 0
    %p433 = por %p431, %p432
    %p434 = scmp.le.s32.totalorder 1, %s23
    %p435 = scmp.lt.s32.totalorder %s23, 3
    %p436 = pnand %p434, %p435
    %p437 = pneg %p436
    // Predicated region
    $region9: #{tpu_custom_call.1} parent=5 // pred_check
      _
    $region10: #{tpu_custom_call.1} parent=5 // pred_check_branch
      %439 = sbr.rel (%p436) target = $region12
    $region11: #{tpu_custom_call.1} parent=5 // pred_region
      %s440 = ssub.s32 %s23, 1
      // Predicated region
      $region13: #{tpu_custom_call.1} parent=11 // pred_check
        %p441 = pneg %p148
      $region14: #{tpu_custom_call.1} parent=11 // pred_check_branch
        %443 = sbr.rel (%p441) target = $region16
      $region15: #{tpu_custom_call.1} parent=11 // pred_region
        _
      $region16: #{tpu_custom_call.1} parent=11 // pred_fallthru
        _
      // Predicated region
      $region17: #{tpu_custom_call.1} parent=11 // pred_check
        %p444 = pneg %p169
      $region18: #{tpu_custom_call.1} parent=11 // pred_check_branch
        %446 = sbr.rel (%p444) target = $region20
      $region19: #{tpu_custom_call.1} parent=11 // pred_region
        _
      $region20: #{tpu_custom_call.1} parent=11 // pred_fallthru
        _
      // Predicated region
      $region21: #{tpu_custom_call.1} parent=11 // pred_check
        %p447 = pneg %p190
      $region22: #{tpu_custom_call.1} parent=11 // pred_check_branch
        %449 = sbr.rel (%p447) target = $region24
      $region23: #{tpu_custom_call.1} parent=11 // pred_region
        _
      $region24: #{tpu_custom_call.1} parent=11 // pred_fallthru
        _
      // Predicated region
      $region25: #{tpu_custom_call.1} parent=11 // pred_check
        %p450 = pneg %p211
      $region26: #{tpu_custom_call.1} parent=11 // pred_check_branch
        %452 = sbr.rel (%p450) target = $region28
      $region27: #{tpu_custom_call.1} parent=11 // pred_region
        _
      $region28: #{tpu_custom_call.1} parent=11 // pred_fallthru
        _
      // Predicated region
      $region29: #{tpu_custom_call.1} parent=11 // pred_check
        %p453 = pneg %p232
      $region30: #{tpu_custom_call.1} parent=11 // pred_check_branch
        %455 = sbr.rel (%p453) target = $region32
      $region31: #{tpu_custom_call.1} parent=11 // pred_region
        _
      $region32: #{tpu_custom_call.1} parent=11 // pred_fallthru
        _
      // Predicated region
      $region33: #{tpu_custom_call.1} parent=11 // pred_check
        %p456 = pneg %p253
      $region34: #{tpu_custom_call.1} parent=11 // pred_check_branch
        %458 = sbr.rel (%p456) target = $region36
      $region35: #{tpu_custom_call.1} parent=11 // pred_region
        _
      $region36: #{tpu_custom_call.1} parent=11 // pred_fallthru
        _
      // Predicated region
      $region37: #{tpu_custom_call.1} parent=11 // pred_check
        %p459 = pneg %p274
      $region38: #{tpu_custom_call.1} parent=11 // pred_check_branch
        %461 = sbr.rel (%p459) target = $region40
      $region39: #{tpu_custom_call.1} parent=11 // pred_region
        _
      $region40: #{tpu_custom_call.1} parent=11 // pred_fallthru
        _
      // Predicated region
      $region41: #{tpu_custom_call.1} parent=11 // pred_check
        %p462 = pneg %p295
      $region42: #{tpu_custom_call.1} parent=11 // pred_check_branch
        %464 = sbr.rel (%p462) target = $region44
      $region43: #{tpu_custom_call.1} parent=11 // pred_region
        _
      $region44: #{tpu_custom_call.1} parent=11 // pred_fallthru
        _
      // Predicated region
      $region45: #{tpu_custom_call.1} parent=11 // pred_check
        %p465 = pneg %p316
      $region46: #{tpu_custom_call.1} parent=11 // pred_check_branch
        %467 = sbr.rel (%p465) target = $region48
      $region47: #{tpu_custom_call.1} parent=11 // pred_region
        _
      $region48: #{tpu_custom_call.1} parent=11 // pred_fallthru
        _
      // Predicated region
      $region49: #{tpu_custom_call.1} parent=11 // pred_check
        %p468 = pneg %p337
      $region50: #{tpu_custom_call.1} parent=11 // pred_check_branch
        %470 = sbr.rel (%p468) target = $region52
      $region51: #{tpu_custom_call.1} parent=11 // pred_region
        _
      $region52: #{tpu_custom_call.1} parent=11 // pred_fallthru
        _
      // Predicated region
      $region53: #{tpu_custom_call.1} parent=11 // pred_check
        %p471 = pneg %p358
      $region54: #{tpu_custom_call.1} parent=11 // pred_check_branch
        %473 = sbr.rel (%p471) target = $region56
      $region55: #{tpu_custom_call.1} parent=11 // pred_region
        _
      $region56: #{tpu_custom_call.1} parent=11 // pred_fallthru
        _
      // Predicated region
      $region57: #{tpu_custom_call.1} parent=11 // pred_check
        %p474 = pneg %p379
      $region58: #{tpu_custom_call.1} parent=11 // pred_check_branch
        %476 = sbr.rel (%p474) target = $region60
      $region59: #{tpu_custom_call.1} parent=11 // pred_region
        _
      $region60: #{tpu_custom_call.1} parent=11 // pred_fallthru
        _
      // Predicated region
      $region61: #{tpu_custom_call.1} parent=11 // pred_check
        %p477 = pneg %p400
      $region62: #{tpu_custom_call.1} parent=11 // pred_check_branch
        %479 = sbr.rel (%p477) target = $region64
      $region63: #{tpu_custom_call.1} parent=11 // pred_region
        _
      $region64: #{tpu_custom_call.1} parent=11 // pred_fallthru
        _
    $region12: #{tpu_custom_call.1} parent=5 // pred_fallthru
      _
    %p480 = scmp.lt.s32.totalorder %s23, 2
    // Predicated region
    $region65: #{tpu_custom_call.1} parent=5 // pred_check
      %p481 = pneg %p480
    $region66: #{tpu_custom_call.1} parent=5 // pred_check_branch
      %483 = sbr.rel (%p481) target = $region68
    $region67: #{tpu_custom_call.1} parent=5 // pred_region
      // Predicated region
      $region69: #{tpu_custom_call.1} parent=67 // pred_check
        %p484 = pneg %p43
      $region70: #{tpu_custom_call.1} parent=67 // pred_check_branch
        %486 = sbr.rel (%p484) target = $region72
      $region71: #{tpu_custom_call.1} parent=67 // pred_region
        %s487 = smul.u32 4, %s23
        %p488 = scmp.lt.s32.totalorder %s487, 7
        %s489 = scalar_select %p488, %s487, 7
        %s490 = smul.addr %s489, 8
        %s491 = scalar_lea.vmem %s0, %s490
        %s492 = smul.u32 4, %s23
      $region72: #{tpu_custom_call.1} parent=67 // pred_fallthru
        _
      // Predicated region
      $region73: #{tpu_custom_call.1} parent=67 // pred_check
        %p493 = pneg %p69
      $region74: #{tpu_custom_call.1} parent=67 // pred_check_branch
        %495 = sbr.rel (%p493) target = $region76
      $region75: #{tpu_custom_call.1} parent=67 // pred_region
        %s496 = smul.u32 2, %s23
        %p497 = scmp.lt.s32.totalorder %s496, 3
        %s498 = scalar_select %p497, %s496, 3
        %s499 = smul.addr %s498, 8
        %s500 = scalar_lea.vmem %s1, %s499
        %s501 = smul.u32 2, %s23
      $region76: #{tpu_custom_call.1} parent=67 // pred_fallthru
        _
      // Predicated region
      $region77: #{tpu_custom_call.1} parent=67 // pred_check
        %p502 = pneg %p95
      $region78: #{tpu_custom_call.1} parent=67 // pred_check_branch
        %504 = sbr.rel (%p502) target = $region80
      $region79: #{tpu_custom_call.1} parent=67 // pred_region
        %s505 = smul.u32 4, %s23
        %p506 = scmp.lt.s32.totalorder %s505, 7
        %s507 = scalar_select %p506, %s505, 7
        %s508 = smul.addr %s507, 8
        %s509 = scalar_lea.vmem %s2, %s508
        %s510 = smul.u32 4, %s23
      $region80: #{tpu_custom_call.1} parent=67 // pred_fallthru
        _
      // Predicated region
      $region81: #{tpu_custom_call.1} parent=67 // pred_check
        %p511 = pneg %p121
      $region82: #{tpu_custom_call.1} parent=67 // pred_check_branch
        %513 = sbr.rel (%p511) target = $region84
      $region83: #{tpu_custom_call.1} parent=67 // pred_region
        %s514 = smul.u32 4, %s23
        %p515 = scmp.lt.s32.totalorder %s514, 7
        %s516 = scalar_select %p515, %s514, 7
        %s517 = smul.addr %s516, 8
        %s518 = scalar_lea.vmem %s3, %s517
        %s519 = smul.u32 4, %s23
      $region84: #{tpu_custom_call.1} parent=67 // pred_fallthru
        _
    $region68: #{tpu_custom_call.1} parent=5 // pred_fallthru
      _
    %p520 = scmp.le.s32.totalorder 1, %s23
    %p521 = scmp.lt.s32.totalorder %s23, 3
    %p522 = pnand %p520, %p521
    %p523 = pneg %p522
    // Predicated region
    $region85: #{tpu_custom_call.1} parent=5 // pred_check
      _
    $region86: #{tpu_custom_call.1} parent=5 // pred_check_branch
      %525 = sbr.rel (%p522) target = $region88
    $region87: #{tpu_custom_call.1} parent=5 // pred_region
      %s526 = ssub.s32 %s23, 1
      %s527 = smul.u32 4, %s28
      %p528 = scmp.lt.s32.totalorder %s527, 7
      %s529 = scalar_select %p528, %s527, 7
      %s530 = smul.addr %s529, 8
      %s531 = scalar_lea.vmem %s0, %s530
      %p532 = pneg %p49
      %p533 = pneg %p46
      %s534 = smul.u32 2, %s28
      %p535 = scmp.lt.s32.totalorder %s534, 3
      %s536 = scalar_select %p535, %s534, 3
      %s537 = smul.addr %s536, 8
      %s538 = scalar_lea.vmem %s1, %s537
      %p539 = pneg %p75
      %p540 = pneg %p72
      %s541 = smul.u32 4, %s28
      %p542 = scmp.lt.s32.totalorder %s541, 7
      %s543 = scalar_select %p542, %s541, 7
      %s544 = smul.addr %s543, 8
      %s545 = scalar_lea.vmem %s2, %s544
      %p546 = pneg %p101
      %p547 = pneg %p98
      %s548 = smul.u32 4, %s28
      %p549 = scmp.lt.s32.totalorder %s548, 7
      %s550 = scalar_select %p549, %s548, 7
      %s551 = smul.addr %s550, 8
      %s552 = scalar_lea.vmem %s3, %s551
      %p553 = pneg %p127
      %p554 = pneg %p124
      %p555 = pneg %p148
      %p556 = pneg %p145
      %p557 = pneg %p169
      %p558 = pneg %p166
      %p559 = pneg %p190
      %p560 = pneg %p187
      %p561 = pneg %p211
      %p562 = pneg %p208
      %p563 = pneg %p232
      %p564 = pneg %p229
      %p565 = pneg %p253
      %p566 = pneg %p250
      %p567 = pneg %p274
      %p568 = pneg %p271
      %p569 = pneg %p295
      %p570 = pneg %p292
      %p571 = pneg %p316
      %p572 = pneg %p313
      %p573 = pneg %p337
      %p574 = pneg %p334
      %p575 = pneg %p358
      %p576 = pneg %p355
      %p577 = pneg %p379
      %p578 = pneg %p376
      %p579 = pneg %p400
      %p580 = pneg %p397
      %p581 = pneg %p426
      %p582 = pneg %p423
      %s583 = smul.u32 4, %s28
      %p584 = scmp.lt.s32.totalorder %s583, 7
      %s585 = scalar_select %p584, %s583, 7
      %s586 = smul.addr %s585, 8
      %s587 = scalar_lea.vmem %s17, %s586
      %s588 = smul.u32 4, %s28
      %p589 = scmp.lt.s32.totalorder %s588, 7
      %s590 = scalar_select %p589, %s588, 7
      %s591 = smul.addr %s590, 8
      %s592 = scalar_lea.vmem %s0, %s591
      %s593 = smul.u32 4, %s28
      %s594 = smul.u32 2, %s28
      %p595 = scmp.lt.s32.totalorder %s594, 3
      %s596 = scalar_select %p595, %s594, 3
      %s597 = smul.addr %s596, 8
      %s598 = scalar_lea.vmem %s1, %s597
      %s599 = smul.u32 2, %s28
      %s600 = smul.u32 4, %s28
      %p601 = scmp.lt.s32.totalorder %s600, 7
      %s602 = scalar_select %p601, %s600, 7
      %s603 = smul.addr %s602, 8
      %s604 = scalar_lea.vmem %s2, %s603
      %s605 = smul.u32 4, %s28
      %s606 = smul.u32 4, %s28
      %p607 = scmp.lt.s32.totalorder %s606, 7
      %s608 = scalar_select %p607, %s606, 7
      %s609 = smul.addr %s608, 8
      %s610 = scalar_lea.vmem %s3, %s609
      %s611 = smul.u32 4, %s28
      %s612 = smul.u32 4, %s28
      %p613 = scmp.lt.s32.totalorder %s612, 7
      %s614 = scalar_select %p613, %s612, 7
      %s615 = smul.addr %s614, 8
      %s616 = scalar_lea.vmem %s17, %s615
      %s617 = smul.u32 4, %s28
      %v618 = vld [vmem:[%s592] sm:$0xff]
      %v619 = vld [vmem:[%s592 + $0x8] sm:$0xff]
      %v620 = vld [vmem:[%s592 + $0x10] sm:$0xff]
      %v621 = vld [vmem:[%s592 + $0x18] sm:$0xff]
      %v622 = vld [vmem:[%s598] sm:$0xff]
      %v623 = vld [vmem:[%s598 + $0x8] sm:$0xff]
      %v624 = vld [vmem:[%s4] sm:$0xff]
      %v625 = vld [vmem:[%s4 + $0x8] sm:$0xff]
      %v626 = vld [vmem:[%s4 + $0x10] sm:$0xff]
      %v627 = vld [vmem:[%s4 + $0x18] sm:$0xff]
      %v628 = vld [vmem:[%s5] sm:$0xff]
      %v629 = vld [vmem:[%s5 + $0x8] sm:$0xff]
      %v630 = vld [vmem:[%s5 + $0x10] sm:$0xff]
      %v631 = vld [vmem:[%s5 + $0x18] sm:$0xff]
      %vm632 = vcmask 261120
      %v634 = vsel %vm632, %v618, 0
      %v637 = vsel %vm632, %v619, 0
      %v640 = vsel %vm632, %v620, 0
      %v643 = vsel %vm632, %v621, 0
      %645 = vmatprep.subr.mxu0 0.0
      %646 = vmatpush1.msra.mxu0 %v628
      %647 = vmatprep.subr.mxu0 0.0
      %648 = vmatpush1.msra.mxu0 %v629
      %649 = vmatprep.subr.mxu0 0.0
      %650 = vmatpush1.msra.mxu0 %v630
      %651 = vmatprep.subr.mxu0 0.0
      %652 = vmatpush1.msra.mxu0 %v631
      %653 = vmatprep.subr.mxu0 0.0
      %654 = vmatpush1.msra.mxu0 0.0
      %655 = vmatprep.subr.mxu0 0.0
      %656 = vmatpush1.msra.mxu0 0.0
      %657 = vmatprep.subr.mxu0 0.0
      %658 = vmatpush1.msra.mxu0 0.0
      %659 = vmatprep.subr.mxu0 0.0
      %660 = vmatpush1.msra.mxu0 0.0
      %661 = vmatprep.subr.mxu0 0.0
      %662 = vmatpush1.msra.mxu0 0.0
      %663 = vmatprep.subr.mxu0 0.0
      %664 = vmatpush1.msra.mxu0 0.0
      %665 = vmatprep.subr.mxu0 0.0
      %666 = vmatpush1.msra.mxu0 0.0
      %667 = vmatprep.subr.mxu0 0.0
      %668 = vmatpush1.msra.mxu0 0.0
      %669 = vmatprep.subr.mxu0 0.0
      %670 = vmatpush1.msra.mxu0 0.0
      %671 = vmatprep.subr.mxu0 0.0
      %672 = vmatpush1.msra.mxu0 0.0
      %673 = vmatprep.subr.mxu0 0.0
      %674 = vmatpush1.msra.mxu0 0.0
      %675 = vmatprep.subr.mxu0 0.0
      %676 = vmatpush1.msra.mxu0 0.0
      %677 = vmatprep.subr.mxu0 0.0
      %678 = vmatpush1.msra.mxu0 0.0
      %679 = vmatprep.subr.mxu0 0.0
      %680 = vmatpush1.msra.mxu0 0.0
      %681 = vmatprep.subr.mxu0 0.0
      %682 = vmatpush1.msra.mxu0 0.0
      %683 = vmatprep.subr.mxu0 0.0
      %684 = vmatpush1.msra.mxu0 0.0
      %685 = vmatprep.subr.mxu0 0.0
      %686 = vmatpush1.msra.mxu0 0.0
      %687 = vmatprep.subr.mxu0 0.0
      %688 = vmatpush1.msra.mxu0 0.0
      %689 = vmatprep.subr.mxu0 0.0
      %690 = vmatpush1.msra.mxu0 0.0
      %691 = vmatprep.subr.mxu0 0.0
      %692 = vmatpush1.msra.mxu0 0.0
      %693 = vmatprep.subr.mxu0 0.0
      %694 = vmatpush1.msra.mxu0 0.0
      %695 = vmatprep.subr.mxu0 0.0
      %696 = vmatpush1.msra.mxu0 0.0
      %697 = vmatprep.subr.mxu0 0.0
      %698 = vmatpush1.msra.mxu0 0.0
      %699 = vmatprep.subr.mxu0 0.0
      %700 = vmatpush1.msra.mxu0 0.0
      %701 = vmatprep.subr.mxu0 0.0
      %702 = vmatpush1.msra.mxu0 0.0
      %703 = vmatprep.subr.mxu0 0.0
      %704 = vmatpush1.msra.mxu0 0.0
      %705 = vmatprep.subr.mxu0 0.0
      %706 = vmatpush1.msra.mxu0 0.0
      %707 = vmatprep.subr.mxu0 0.0
      %708 = vmatpush1.msra.mxu0 0.0
      %709 = vmatprep.mubr.f32.mxu0 0.0
      %710 = vmatmul.mubr.f32.gmra.mrb[0].mxu0 %v634
      %v711 = vpop.f32.mrb[0].mxu0
      %v712 = vadd.f32 0.0, %v711
      %v713 = vpop.f32.mrb[0].mxu0
      %714 = vmatprep.mubr.f32.mxu0 0.0
      %715 = vmatmul.mubr.f32.gmra.mrb[0].mxu0 %v637
      %v716 = vpop.f32.mrb[0].mxu0
      %v717 = vadd.f32 0.0, %v716
      %v718 = vpop.f32.mrb[0].mxu0
      %719 = vmatprep.mubr.f32.mxu0 0.0
      %720 = vmatmul.mubr.f32.gmra.mrb[0].mxu0 %v640
      %v721 = vpop.f32.mrb[0].mxu0
      %v722 = vadd.f32 0.0, %v721
      %v723 = vpop.f32.mrb[0].mxu0
      %724 = vmatprep.mubr.f32.mxu0 0.0
      %725 = vmatmul.mubr.f32.gmra.mrb[0].mxu0 %v643
      %v726 = vpop.f32.mrb[0].mxu0
      %v727 = vadd.f32 0.0, %v726
      %v728 = vpop.f32.mrb[0].mxu0
      %729 = vdwg.mxu0
      %v730 = vld [vmem:[%s6] sm:$0xff]
      %v731 = vld [vmem:[%s6 + $0x8] sm:$0xff]
      %v732 = vld [vmem:[%s6 + $0x10] sm:$0xff]
      %v733 = vld [vmem:[%s6 + $0x18] sm:$0xff]
      %v735 = vsel %vm632, %v622, 0
      %v738 = vsel %vm632, %v623, 0
      %740 = vmatprep.subr.mxu0 0.0
      %741 = vmatpush1.msra.mxu0 %v730
      %742 = vmatprep.subr.mxu0 0.0
      %743 = vmatpush1.msra.mxu0 %v731
      %744 = vmatprep.subr.mxu0 0.0
      %745 = vmatpush1.msra.mxu0 %v732
      %746 = vmatprep.subr.mxu0 0.0
      %747 = vmatpush1.msra.mxu0 %v733
      %748 = vmatprep.subr.mxu0 0.0
      %749 = vmatpush1.msra.mxu0 0.0
      %750 = vmatprep.subr.mxu0 0.0
      %751 = vmatpush1.msra.mxu0 0.0
      %752 = vmatprep.subr.mxu0 0.0
      %753 = vmatpush1.msra.mxu0 0.0
      %754 = vmatprep.subr.mxu0 0.0
      %755 = vmatpush1.msra.mxu0 0.0
      %756 = vmatprep.subr.mxu0 0.0
      %757 = vmatpush1.msra.mxu0 0.0
      %758 = vmatprep.subr.mxu0 0.0
      %759 = vmatpush1.msra.mxu0 0.0
      %760 = vmatprep.subr.mxu0 0.0
      %761 = vmatpush1.msra.mxu0 0.0
      %762 = vmatprep.subr.mxu0 0.0
      %763 = vmatpush1.msra.mxu0 0.0
      %764 = vmatprep.subr.mxu0 0.0
      %765 = vmatpush1.msra.mxu0 0.0
      %766 = vmatprep.subr.mxu0 0.0
      %767 = vmatpush1.msra.mxu0 0.0
      %768 = vmatprep.subr.mxu0 0.0
      %769 = vmatpush1.msra.mxu0 0.0
      %770 = vmatprep.subr.mxu0 0.0
      %771 = vmatpush1.msra.mxu0 0.0
      %772 = vmatprep.subr.mxu0 0.0
      %773 = vmatpush1.msra.mxu0 0.0
      %774 = vmatprep.subr.mxu0 0.0
      %775 = vmatpush1.msra.mxu0 0.0
      %776 = vmatprep.subr.mxu0 0.0
      %777 = vmatpush1.msra.mxu0 0.0
      %778 = vmatprep.subr.mxu0 0.0
      %779 = vmatpush1.msra.mxu0 0.0
      %780 = vmatprep.subr.mxu0 0.0
      %781 = vmatpush1.msra.mxu0 0.0
      %782 = vmatprep.subr.mxu0 0.0
      %783 = vmatpush1.msra.mxu0 0.0
      %784 = vmatprep.subr.mxu0 0.0
      %785 = vmatpush1.msra.mxu0 0.0
      %786 = vmatprep.subr.mxu0 0.0
      %787 = vmatpush1.msra.mxu0 0.0
      %788 = vmatprep.subr.mxu0 0.0
      %789 = vmatpush1.msra.mxu0 0.0
      %790 = vmatprep.subr.mxu0 0.0
      %791 = vmatpush1.msra.mxu0 0.0
      %792 = vmatprep.subr.mxu0 0.0
      %793 = vmatpush1.msra.mxu0 0.0
      %794 = vmatprep.subr.mxu0 0.0
      %795 = vmatpush1.msra.mxu0 0.0
      %796 = vmatprep.subr.mxu0 0.0
      %797 = vmatpush1.msra.mxu0 0.0
      %798 = vmatprep.subr.mxu0 0.0
      %799 = vmatpush1.msra.mxu0 0.0
      %800 = vmatprep.subr.mxu0 0.0
      %801 = vmatpush1.msra.mxu0 0.0
      %802 = vmatprep.subr.mxu0 0.0
      %803 = vmatpush1.msra.mxu0 0.0
      %804 = vmatprep.mubr.f32.mxu0 0.0
      %805 = vmatmul.mubr.f32.gmra.mrb[0].mxu0 %v735
      %v806 = vpop.f32.mrb[0].mxu0
      %v807 = vadd.f32 0.0, %v806
      %v808 = vpop.f32.mrb[0].mxu0
      %809 = vmatprep.mubr.f32.mxu0 0.0
      %810 = vmatmul.mubr.f32.gmra.mrb[0].mxu0 %v738
      %v811 = vpop.f32.mrb[0].mxu0
      %v812 = vadd.f32 0.0, %v811
      %v813 = vpop.f32.mrb[0].mxu0
      %814 = vdwg.mxu0
      %v815 = vld [vmem:[%s7] sm:$0xff]
      %v816 = vld [vmem:[%s7 + $0x8] sm:$0xff]
      %v817 = vld [vmem:[%s7 + $0x10] sm:$0xff]
      %v818 = vld [vmem:[%s7 + $0x18] sm:$0xff]
      %819 = vmatprep.subr.mxu0 0.0
      %820 = vmatpush1.msra.mxu0 %v815
      %821 = vmatprep.subr.mxu0 0.0
      %822 = vmatpush1.msra.mxu0 %v816
      %823 = vmatprep.subr.mxu0 0.0
      %824 = vmatpush1.msra.mxu0 %v817
      %825 = vmatprep.subr.mxu0 0.0
      %826 = vmatpush1.msra.mxu0 %v818
      %827 = vmatprep.subr.mxu0 0.0
      %828 = vmatpush1.msra.mxu0 0.0
      %829 = vmatprep.subr.mxu0 0.0
      %830 = vmatpush1.msra.mxu0 0.0
      %831 = vmatprep.subr.mxu0 0.0
      %832 = vmatpush1.msra.mxu0 0.0
      %833 = vmatprep.subr.mxu0 0.0
      %834 = vmatpush1.msra.mxu0 0.0
      %835 = vmatprep.subr.mxu0 0.0
      %836 = vmatpush1.msra.mxu0 0.0
      %837 = vmatprep.subr.mxu0 0.0
      %838 = vmatpush1.msra.mxu0 0.0
      %839 = vmatprep.subr.mxu0 0.0
      %840 = vmatpush1.msra.mxu0 0.0
      %841 = vmatprep.subr.mxu0 0.0
      %842 = vmatpush1.msra.mxu0 0.0
      %843 = vmatprep.subr.mxu0 0.0
      %844 = vmatpush1.msra.mxu0 0.0
      %845 = vmatprep.subr.mxu0 0.0
      %846 = vmatpush1.msra.mxu0 0.0
      %847 = vmatprep.subr.mxu0 0.0
      %848 = vmatpush1.msra.mxu0 0.0
      %849 = vmatprep.subr.mxu0 0.0
      %850 = vmatpush1.msra.mxu0 0.0
      %851 = vmatprep.subr.mxu0 0.0
      %852 = vmatpush1.msra.mxu0 0.0
      %853 = vmatprep.subr.mxu0 0.0
      %854 = vmatpush1.msra.mxu0 0.0
      %855 = vmatprep.subr.mxu0 0.0
      %856 = vmatpush1.msra.mxu0 0.0
      %857 = vmatprep.subr.mxu0 0.0
      %858 = vmatpush1.msra.mxu0 0.0
      %859 = vmatprep.subr.mxu0 0.0
      %860 = vmatpush1.msra.mxu0 0.0
      %861 = vmatprep.subr.mxu0 0.0
      %862 = vmatpush1.msra.mxu0 0.0
      %863 = vmatprep.subr.mxu0 0.0
      %864 = vmatpush1.msra.mxu0 0.0
      %865 = vmatprep.subr.mxu0 0.0
      %866 = vmatpush1.msra.mxu0 0.0
      %867 = vmatprep.subr.mxu0 0.0
      %868 = vmatpush1.msra.mxu0 0.0
      %869 = vmatprep.subr.mxu0 0.0
      %870 = vmatpush1.msra.mxu0 0.0
      %871 = vmatprep.subr.mxu0 0.0
      %872 = vmatpush1.msra.mxu0 0.0
      %873 = vmatprep.subr.mxu0 0.0
      %874 = vmatpush1.msra.mxu0 0.0
      %875 = vmatprep.subr.mxu0 0.0
      %876 = vmatpush1.msra.mxu0 0.0
      %877 = vmatprep.subr.mxu0 0.0
      %878 = vmatpush1.msra.mxu0 0.0
      %879 = vmatprep.subr.mxu0 0.0
      %880 = vmatpush1.msra.mxu0 0.0
      %881 = vmatprep.subr.mxu0 0.0
      %882 = vmatpush1.msra.mxu0 0.0
      %883 = vmatprep.mubr.f32.mxu0 0.0
      %884 = vmatmul.mubr.f32.gmra.mrb[0].mxu0 %v735
      %v885 = vpop.f32.mrb[0].mxu0
      %v886 = vadd.f32 0.0, %v885
      %v887 = vpop.f32.mrb[0].mxu0
      %888 = vmatprep.mubr.f32.mxu0 0.0
      %889 = vmatmul.mubr.f32.gmra.mrb[0].mxu0 %v738
      %v890 = vpop.f32.mrb[0].mxu0
      %v891 = vadd.f32 0.0, %v890
      %v892 = vpop.f32.mrb[0].mxu0
      %893 = vdwg.mxu0
      %vm894 = vcmask 130048
      %v896 = vsel %vm894, %v712, 0
      %v899 = vsel %vm894, %v717, 0
      %v902 = vsel %vm894, %v722, 0
      %v905 = vsel %vm894, %v727, 0
      %v908 = vsel %vm894, %v807, 0
      %v911 = vsel %vm894, %v812, 0
      %913 = vmatprep.subr.mxu0 0.0
      %914 = vmatpush1.xpose.msra.mxu0 %v908
      %915 = vmatprep.subr.mxu0 0.0
      %916 = vmatpush1.xpose.msra.mxu0 %v911
      %917 = vmatprep.subr.mxu0 0.0
      %918 = vmatpush1.xpose.msra.mxu0 0.0
      %919 = vmatprep.subr.mxu0 0.0
      %920 = vmatpush1.xpose.msra.mxu0 0.0
      %921 = vmatprep.subr.mxu0 0.0
      %922 = vmatpush1.xpose.msra.mxu0 0.0
      %923 = vmatprep.subr.mxu0 0.0
      %924 = vmatpush1.xpose.msra.mxu0 0.0
      %925 = vmatprep.subr.mxu0 0.0
      %926 = vmatpush1.xpose.msra.mxu0 0.0
      %927 = vmatprep.subr.mxu0 0.0
      %928 = vmatpush1.xpose.msra.mxu0 0.0
      %929 = vmatprep.subr.mxu0 0.0
      %930 = vmatpush1.xpose.msra.mxu0 0.0
      %931 = vmatprep.subr.mxu0 0.0
      %932 = vmatpush1.xpose.msra.mxu0 0.0
      %933 = vmatprep.subr.mxu0 0.0
      %934 = vmatpush1.xpose.msra.mxu0 0.0
      %935 = vmatprep.subr.mxu0 0.0
      %936 = vmatpush1.xpose.msra.mxu0 0.0
      %937 = vmatprep.subr.mxu0 0.0
      %938 = vmatpush1.xpose.msra.mxu0 0.0
      %939 = vmatprep.subr.mxu0 0.0
      %940 = vmatpush1.xpose.msra.mxu0 0.0
      %941 = vmatprep.subr.mxu0 0.0
      %942 = vmatpush1.xpose.msra.mxu0 0.0
      %943 = vmatprep.subr.mxu0 0.0
      %944 = vmatpush1.xpose.msra.mxu0 0.0
      %945 = vmatprep.subr.mxu0 0.0
      %946 = vmatpush1.xpose.msra.mxu0 0.0
      %947 = vmatprep.subr.mxu0 0.0
      %948 = vmatpush1.xpose.msra.mxu0 0.0
      %949 = vmatprep.subr.mxu0 0.0
      %950 = vmatpush1.xpose.msra.mxu0 0.0
      %951 = vmatprep.subr.mxu0 0.0
      %952 = vmatpush1.xpose.msra.mxu0 0.0
      %953 = vmatprep.subr.mxu0 0.0
      %954 = vmatpush1.xpose.msra.mxu0 0.0
      %955 = vmatprep.subr.mxu0 0.0
      %956 = vmatpush1.xpose.msra.mxu0 0.0
      %957 = vmatprep.subr.mxu0 0.0
      %958 = vmatpush1.xpose.msra.mxu0 0.0
      %959 = vmatprep.subr.mxu0 0.0
      %960 = vmatpush1.xpose.msra.mxu0 0.0
      %961 = vmatprep.subr.mxu0 0.0
      %962 = vmatpush1.xpose.msra.mxu0 0.0
      %963 = vmatprep.subr.mxu0 0.0
      %964 = vmatpush1.xpose.msra.mxu0 0.0
      %965 = vmatprep.subr.mxu0 0.0
      %966 = vmatpush1.xpose.msra.mxu0 0.0
      %967 = vmatprep.subr.mxu0 0.0
      %968 = vmatpush1.xpose.msra.mxu0 0.0
      %969 = vmatprep.subr.mxu0 0.0
      %970 = vmatpush1.xpose.msra.mxu0 0.0
      %971 = vmatprep.subr.mxu0 0.0
      %972 = vmatpush1.xpose.msra.mxu0 0.0
      %973 = vmatprep.subr.mxu0 0.0
      %974 = vmatpush1.xpose.msra.mxu0 0.0
      %975 = vmatprep.subr.mxu0 0.0
      %976 = vmatpush1.xpose.msra.mxu0 0.0
      %977 = vmatprep.mubr.f32.mxu0 0.0
      %978 = vmatmul.mubr.f32.gmra.mrb[0].mxu0 %v896
      %v979 = vpop.f32.mrb[0].mxu0
      %v980 = vadd.f32 %v624, %v979
      %v981 = vpop.f32.mrb[0].mxu0
      %982 = vmatprep.mubr.f32.mxu0 0.0
      %983 = vmatmul.mubr.f32.gmra.mrb[0].mxu0 %v899
      %v984 = vpop.f32.mrb[0].mxu0
      %v985 = vadd.f32 %v625, %v984
      %v986 = vpop.f32.mrb[0].mxu0
      %987 = vmatprep.mubr.f32.mxu0 0.0
      %988 = vmatmul.mubr.f32.gmra.mrb[0].mxu0 %v902
      %v989 = vpop.f32.mrb[0].mxu0
      %v990 = vadd.f32 %v626, %v989
      %v991 = vpop.f32.mrb[0].mxu0
      %992 = vmatprep.mubr.f32.mxu0 0.0
      %993 = vmatmul.mubr.f32.gmra.mrb[0].mxu0 %v905
      %v994 = vpop.f32.mrb[0].mxu0
      %v995 = vadd.f32 %v627, %v994
      %v996 = vpop.f32.mrb[0].mxu0
      %997 = vdwg.mxu0
      %v998 = vsel %vm894, %v980, -inf
      %999 = vmax.xlane.f32.xlu0 %v998
      %v1000 = vpop.xlane.xlu0 %999
      %v1001 = vsel %vm894, %v985, -inf
      %1002 = vmax.xlane.f32.xlu0 %v1001
      %v1003 = vpop.xlane.xlu0 %1002
      %v1004 = vsel %vm894, %v990, -inf
      %1005 = vmax.xlane.f32.xlu0 %v1004
      %v1006 = vpop.xlane.xlu0 %1005
      %v1007 = vsel %vm894, %v995, -inf
      %1008 = vmax.xlane.f32.xlu0 %v1007
      %v1009 = vpop.xlane.xlu0 %1008
      %v1010 = vsub.f32 %v980, %v1000
      %v1011 = vsub.f32 %v985, %v1003
      %v1012 = vsub.f32 %v990, %v1006
      %v1013 = vsub.f32 %v995, %v1009
      %v1014 = vmul.f32 %v1010, 1.442695
      %v1015 = vpow.pop %v1014
      %v1016 = vmul.f32 %v1011, 1.442695
      %v1017 = vpow.pop %v1016
      %v1018 = vmul.f32 %v1012, 1.442695
      %v1019 = vpow.pop %v1018
      %v1020 = vmul.f32 %v1013, 1.442695
      %v1021 = vpow.pop %v1020
      %v1022 = vsel %vm894, %v1015, 0.0
      %1023 = vadd.xlane.f32.xlu0 %v1022
      %v1024 = vpop.xlane.xlu0 %1023
      %v1025 = vsel %vm894, %v1017, 0.0
      %1026 = vadd.xlane.f32.xlu0 %v1025
      %v1027 = vpop.xlane.xlu0 %1026
      %v1028 = vsel %vm894, %v1019, 0.0
      %1029 = vadd.xlane.f32.xlu0 %v1028
      %v1030 = vpop.xlane.xlu0 %1029
      %v1031 = vsel %vm894, %v1021, 0.0
      %1032 = vadd.xlane.f32.xlu0 %v1031
      %v1033 = vpop.xlane.xlu0 %1032
      %v1034 = vrcp.pop %v1024
      %v1035 = vrcp.pop %v1027
      %v1036 = vrcp.pop %v1030
      %v1037 = vrcp.pop %v1033
      %v1039 = vsel %vm894, %v1015, 0
      %v1042 = vsel %vm894, %v1017, 0
      %v1045 = vsel %vm894, %v1019, 0
      %v1048 = vsel %vm894, %v1021, 0
      %1050 = vmatprep.subr.mxu0 0.0
      %1051 = vmatpush1.msra.mxu0 %v886
      %1052 = vmatprep.subr.mxu0 0.0
      %1053 = vmatpush1.msra.mxu0 %v891
      %1054 = vmatprep.subr.mxu0 0.0
      %1055 = vmatpush1.msra.mxu0 0.0
      %1056 = vmatprep.subr.mxu0 0.0
      %1057 = vmatpush1.msra.mxu0 0.0
      %1058 = vmatprep.subr.mxu0 0.0
      %1059 = vmatpush1.msra.mxu0 0.0
      %1060 = vmatprep.subr.mxu0 0.0
      %1061 = vmatpush1.msra.mxu0 0.0
      %1062 = vmatprep.subr.mxu0 0.0
      %1063 = vmatpush1.msra.mxu0 0.0
      %1064 = vmatprep.subr.mxu0 0.0
      %1065 = vmatpush1.msra.mxu0 0.0
      %1066 = vmatprep.subr.mxu0 0.0
      %1067 = vmatpush1.msra.mxu0 0.0
      %1068 = vmatprep.subr.mxu0 0.0
      %1069 = vmatpush1.msra.mxu0 0.0
      %1070 = vmatprep.subr.mxu0 0.0
      %1071 = vmatpush1.msra.mxu0 0.0
      %1072 = vmatprep.subr.mxu0 0.0
      %1073 = vmatpush1.msra.mxu0 0.0
      %1074 = vmatprep.subr.mxu0 0.0
      %1075 = vmatpush1.msra.mxu0 0.0
      %1076 = vmatprep.subr.mxu0 0.0
      %1077 = vmatpush1.msra.mxu0 0.0
      %1078 = vmatprep.subr.mxu0 0.0
      %1079 = vmatpush1.msra.mxu0 0.0
      %1080 = vmatprep.subr.mxu0 0.0
      %1081 = vmatpush1.msra.mxu0 0.0
      %1082 = vmatprep.subr.mxu0 0.0
      %1083 = vmatpush1.msra.mxu0 0.0
      %1084 = vmatprep.subr.mxu0 0.0
      %1085 = vmatpush1.msra.mxu0 0.0
      %1086 = vmatprep.subr.mxu0 0.0
      %1087 = vmatpush1.msra.mxu0 0.0
      %1088 = vmatprep.subr.mxu0 0.0
      %1089 = vmatpush1.msra.mxu0 0.0
      %1090 = vmatprep.subr.mxu0 0.0
      %1091 = vmatpush1.msra.mxu0 0.0
      %1092 = vmatprep.subr.mxu0 0.0
      %1093 = vmatpush1.msra.mxu0 0.0
      %1094 = vmatprep.subr.mxu0 0.0
      %1095 = vmatpush1.msra.mxu0 0.0
      %1096 = vmatprep.subr.mxu0 0.0
      %1097 = vmatpush1.msra.mxu0 0.0
      %1098 = vmatprep.subr.mxu0 0.0
      %1099 = vmatpush1.msra.mxu0 0.0
      %1100 = vmatprep.subr.mxu0 0.0
      %1101 = vmatpush1.msra.mxu0 0.0
      %1102 = vmatprep.subr.mxu0 0.0
      %1103 = vmatpush1.msra.mxu0 0.0
      %1104 = vmatprep.subr.mxu0 0.0
      %1105 = vmatpush1.msra.mxu0 0.0
      %1106 = vmatprep.subr.mxu0 0.0
      %1107 = vmatpush1.msra.mxu0 0.0
      %1108 = vmatprep.subr.mxu0 0.0
      %1109 = vmatpush1.msra.mxu0 0.0
      %1110 = vmatprep.subr.mxu0 0.0
      %1111 = vmatpush1.msra.mxu0 0.0
      %1112 = vmatprep.subr.mxu0 0.0
      %1113 = vmatpush1.msra.mxu0 0.0
      %1114 = vmatprep.mubr.f32.mxu0 0.0
      %1115 = vmatmul.mubr.f32.gmra.mrb[0].mxu0 %v1039
      %v1116 = vpop.f32.mrb[0].mxu0
      %v1117 = vadd.f32 0.0, %v1116
      %v1118 = vpop.f32.mrb[0].mxu0
      %1119 = vmatprep.mubr.f32.mxu0 0.0
      %1120 = vmatmul.mubr.f32.gmra.mrb[0].mxu0 %v1042
      %v1121 = vpop.f32.mrb[0].mxu0
      %v1122 = vadd.f32 0.0, %v1121
      %v1123 = vpop.f32.mrb[0].mxu0
      %1124 = vmatprep.mubr.f32.mxu0 0.0
      %1125 = vmatmul.mubr.f32.gmra.mrb[0].mxu0 %v1045
      %v1126 = vpop.f32.mrb[0].mxu0
      %v1127 = vadd.f32 0.0, %v1126
      %v1128 = vpop.f32.mrb[0].mxu0
      %1129 = vmatprep.mubr.f32.mxu0 0.0
      %1130 = vmatmul.mubr.f32.gmra.mrb[0].mxu0 %v1048
      %v1131 = vpop.f32.mrb[0].mxu0
      %v1132 = vadd.f32 0.0, %v1131
      %v1133 = vpop.f32.mrb[0].mxu0
      %1134 = vdwg.mxu0
      %v1135 = vmul.f32 %v1117, %v1034
      %v1136 = vmul.f32 %v1122, %v1035
      %v1137 = vmul.f32 %v1127, %v1036
      %v1138 = vmul.f32 %v1132, %v1037
      %v1139 = vld [vmem:[%s8] sm:$0xff]
      %v1140 = vld [vmem:[%s8 + $0x8] sm:$0xff]
      %s1141 = scalar_lea.vmem %s5, 32
      %v1142 = vld [vmem:[%s1141] sm:$0xff]
      %v1143 = vld [vmem:[%s1141 + $0x8] sm:$0xff]
      %v1144 = vld [vmem:[%s1141 + $0x10] sm:$0xff]
      %v1145 = vld [vmem:[%s1141 + $0x18] sm:$0xff]
      %1146 = vmatprep.subr.mxu0 0.0
      %1147 = vmatpush1.msra.mxu0 %v1142
      %1148 = vmatprep.subr.mxu0 0.0
      %1149 = vmatpush1.msra.mxu0 %v1143
      %1150 = vmatprep.subr.mxu0 0.0
      %1151 = vmatpush1.msra.mxu0 %v1144
      %1152 = vmatprep.subr.mxu0 0.0
      %1153 = vmatpush1.msra.mxu0 %v1145
      %1154 = vmatprep.subr.mxu0 0.0
      %1155 = vmatpush1.msra.mxu0 0.0
      %1156 = vmatprep.subr.mxu0 0.0
      %1157 = vmatpush1.msra.mxu0 0.0
      %1158 = vmatprep.subr.mxu0 0.0
      %1159 = vmatpush1.msra.mxu0 0.0
      %1160 = vmatprep.subr.mxu0 0.0
      %1161 = vmatpush1.msra.mxu0 0.0
      %1162 = vmatprep.subr.mxu0 0.0
      %1163 = vmatpush1.msra.mxu0 0.0
      %1164 = vmatprep.subr.mxu0 0.0
      %1165 = vmatpush1.msra.mxu0 0.0
      %1166 = vmatprep.subr.mxu0 0.0
      %1167 = vmatpush1.msra.mxu0 0.0
      %1168 = vmatprep.subr.mxu0 0.0
      %1169 = vmatpush1.msra.mxu0 0.0
      %1170 = vmatprep.subr.mxu0 0.0
      %1171 = vmatpush1.msra.mxu0 0.0
      %1172 = vmatprep.subr.mxu0 0.0
      %1173 = vmatpush1.msra.mxu0 0.0
      %1174 = vmatprep.subr.mxu0 0.0
      %1175 = vmatpush1.msra.mxu0 0.0
      %1176 = vmatprep.subr.mxu0 0.0
      %1177 = vmatpush1.msra.mxu0 0.0
      %1178 = vmatprep.subr.mxu0 0.0
      %1179 = vmatpush1.msra.mxu0 0.0
      %1180 = vmatprep.subr.mxu0 0.0
      %1181 = vmatpush1.msra.mxu0 0.0
      %1182 = vmatprep.subr.mxu0 0.0
      %1183 = vmatpush1.msra.mxu0 0.0
      %1184 = vmatprep.subr.mxu0 0.0
      %1185 = vmatpush1.msra.mxu0 0.0
      %1186 = vmatprep.subr.mxu0 0.0
      %1187 = vmatpush1.msra.mxu0 0.0
      %1188 = vmatprep.subr.mxu0 0.0
      %1189 = vmatpush1.msra.mxu0 0.0
      %1190 = vmatprep.subr.mxu0 0.0
      %1191 = vmatpush1.msra.mxu0 0.0
      %1192 = vmatprep.subr.mxu0 0.0
      %1193 = vmatpush1.msra.mxu0 0.0
      %1194 = vmatprep.subr.mxu0 0.0
      %1195 = vmatpush1.msra.mxu0 0.0
      %1196 = vmatprep.subr.mxu0 0.0
      %1197 = vmatpush1.msra.mxu0 0.0
      %1198 = vmatprep.subr.mxu0 0.0
      %1199 = vmatpush1.msra.mxu0 0.0
      %1200 = vmatprep.subr.mxu0 0.0
      %1201 = vmatpush1.msra.mxu0 0.0
      %1202 = vmatprep.subr.mxu0 0.0
      %1203 = vmatpush1.msra.mxu0 0.0
      %1204 = vmatprep.subr.mxu0 0.0
      %1205 = vmatpush1.msra.mxu0 0.0
      %1206 = vmatprep.subr.mxu0 0.0
      %1207 = vmatpush1.msra.mxu0 0.0
      %1208 = vmatprep.subr.mxu0 0.0
      %1209 = vmatpush1.msra.mxu0 0.0
      %1210 = vmatprep.mubr.f32.mxu0 0.0
      %1211 = vmatmul.mubr.f32.gmra.mrb[0].mxu0 %v634
      %v1212 = vpop.f32.mrb[0].mxu0
      %v1213 = vadd.f32 0.0, %v1212
      %v1214 = vpop.f32.mrb[0].mxu0
      %1215 = vmatprep.mubr.f32.mxu0 0.0
      %1216 = vmatmul.mubr.f32.gmra.mrb[0].mxu0 %v637
      %v1217 = vpop.f32.mrb[0].mxu0
      %v1218 = vadd.f32 0.0, %v1217
      %v1219 = vpop.f32.mrb[0].mxu0
      %1220 = vmatprep.mubr.f32.mxu0 0.0
      %1221 = vmatmul.mubr.f32.gmra.mrb[0].mxu0 %v640
      %v1222 = vpop.f32.mrb[0].mxu0
      %v1223 = vadd.f32 0.0, %v1222
      %v1224 = vpop.f32.mrb[0].mxu0
      %1225 = vmatprep.mubr.f32.mxu0 0.0
      %1226 = vmatmul.mubr.f32.gmra.mrb[0].mxu0 %v643
      %v1227 = vpop.f32.mrb[0].mxu0
      %v1228 = vadd.f32 0.0, %v1227
      %v1229 = vpop.f32.mrb[0].mxu0
      %1230 = vdwg.mxu0
      %s1231 = scalar_lea.vmem %s6, 32
      %v1232 = vld [vmem:[%s1231] sm:$0xff]
      %v1233 = vld [vmem:[%s1231 + $0x8] sm:$0xff]
      %v1234 = vld [vmem:[%s1231 + $0x10] sm:$0xff]
      %v1235 = vld [vmem:[%s1231 + $0x18] sm:$0xff]
      %1236 = vmatprep.subr.mxu0 0.0
      %1237 = vmatpush1.msra.mxu0 %v1232
      %1238 = vmatprep.subr.mxu0 0.0
      %1239 = vmatpush1.msra.mxu0 %v1233
      %1240 = vmatprep.subr.mxu0 0.0
      %1241 = vmatpush1.msra.mxu0 %v1234
      %1242 = vmatprep.subr.mxu0 0.0
      %1243 = vmatpush1.msra.mxu0 %v1235
      %1244 = vmatprep.subr.mxu0 0.0
      %1245 = vmatpush1.msra.mxu0 0.0
      %1246 = vmatprep.subr.mxu0 0.0
      %1247 = vmatpush1.msra.mxu0 0.0
      %1248 = vmatprep.subr.mxu0 0.0
      %1249 = vmatpush1.msra.mxu0 0.0
      %1250 = vmatprep.subr.mxu0 0.0
      %1251 = vmatpush1.msra.mxu0 0.0
      %1252 = vmatprep.subr.mxu0 0.0
      %1253 = vmatpush1.msra.mxu0 0.0
      %1254 = vmatprep.subr.mxu0 0.0
      %1255 = vmatpush1.msra.mxu0 0.0
      %1256 = vmatprep.subr.mxu0 0.0
      %1257 = vmatpush1.msra.mxu0 0.0
      %1258 = vmatprep.subr.mxu0 0.0
      %1259 = vmatpush1.msra.mxu0 0.0
      %1260 = vmatprep.subr.mxu0 0.0
      %1261 = vmatpush1.msra.mxu0 0.0
      %1262 = vmatprep.subr.mxu0 0.0
      %1263 = vmatpush1.msra.mxu0 0.0
      %1264 = vmatprep.subr.mxu0 0.0
      %1265 = vmatpush1.msra.mxu0 0.0
      %1266 = vmatprep.subr.mxu0 0.0
      %1267 = vmatpush1.msra.mxu0 0.0
      %1268 = vmatprep.subr.mxu0 0.0
      %1269 = vmatpush1.msra.mxu0 0.0
      %1270 = vmatprep.subr.mxu0 0.0
      %1271 = vmatpush1.msra.mxu0 0.0
      %1272 = vmatprep.subr.mxu0 0.0
      %1273 = vmatpush1.msra.mxu0 0.0
      %1274 = vmatprep.subr.mxu0 0.0
      %1275 = vmatpush1.msra.mxu0 0.0
      %1276 = vmatprep.subr.mxu0 0.0
      %1277 = vmatpush1.msra.mxu0 0.0
      %1278 = vmatprep.subr.mxu0 0.0
      %1279 = vmatpush1.msra.mxu0 0.0
      %1280 = vmatprep.subr.mxu0 0.0
      %1281 = vmatpush1.msra.mxu0 0.0
      %1282 = vmatprep.subr.mxu0 0.0
      %1283 = vmatpush1.msra.mxu0 0.0
      %1284 = vmatprep.subr.mxu0 0.0
      %1285 = vmatpush1.msra.mxu0 0.0
      %1286 = vmatprep.subr.mxu0 0.0
      %1287 = vmatpush1.msra.mxu0 0.0
      %1288 = vmatprep.subr.mxu0 0.0
      %1289 = vmatpush1.msra.mxu0 0.0
      %1290 = vmatprep.subr.mxu0 0.0
      %1291 = vmatpush1.msra.mxu0 0.0
      %1292 = vmatprep.subr.mxu0 0.0
      %1293 = vmatpush1.msra.mxu0 0.0
      %1294 = vmatprep.subr.mxu0 0.0
      %1295 = vmatpush1.msra.mxu0 0.0
      %1296 = vmatprep.subr.mxu0 0.0
      %1297 = vmatpush1.msra.mxu0 0.0
      %1298 = vmatprep.subr.mxu0 0.0
      %1299 = vmatpush1.msra.mxu0 0.0
      %1300 = vmatprep.mubr.f32.mxu0 0.0
      %1301 = vmatmul.mubr.f32.gmra.mrb[0].mxu0 %v735
      %v1302 = vpop.f32.mrb[0].mxu0
      %v1303 = vadd.f32 0.0, %v1302
      %v1304 = vpop.f32.mrb[0].mxu0
      %1305 = vmatprep.mubr.f32.mxu0 0.0
      %1306 = vmatmul.mubr.f32.gmra.mrb[0].mxu0 %v738
      %v1307 = vpop.f32.mrb[0].mxu0
      %v1308 = vadd.f32 0.0, %v1307
      %v1309 = vpop.f32.mrb[0].mxu0
      %1310 = vdwg.mxu0
      %s1311 = scalar_lea.vmem %s7, 32
      %v1312 = vld [vmem:[%s1311] sm:$0xff]
      %v1313 = vld [vmem:[%s1311 + $0x8] sm:$0xff]
      %v1314 = vld [vmem:[%s1311 + $0x10] sm:$0xff]
      %v1315 = vld [vmem:[%s1311 + $0x18] sm:$0xff]
      %1316 = vmatprep.subr.mxu0 0.0
      %1317 = vmatpush1.msra.mxu0 %v1312
      %1318 = vmatprep.subr.mxu0 0.0
      %1319 = vmatpush1.msra.mxu0 %v1313
      %1320 = vmatprep.subr.mxu0 0.0
      %1321 = vmatpush1.msra.mxu0 %v1314
      %1322 = vmatprep.subr.mxu0 0.0
      %1323 = vmatpush1.msra.mxu0 %v1315
      %1324 = vmatprep.subr.mxu0 0.0
      %1325 = vmatpush1.msra.mxu0 0.0
      %1326 = vmatprep.subr.mxu0 0.0
      %1327 = vmatpush1.msra.mxu0 0.0
      %1328 = vmatprep.subr.mxu0 0.0
      %1329 = vmatpush1.msra.mxu0 0.0
      %1330 = vmatprep.subr.mxu0 0.0
      %1331 = vmatpush1.msra.mxu0 0.0
      %1332 = vmatprep.subr.mxu0 0.0
      %1333 = vmatpush1.msra.mxu0 0.0
      %1334 = vmatprep.subr.mxu0 0.0
      %1335 = vmatpush1.msra.mxu0 0.0
      %1336 = vmatprep.subr.mxu0 0.0
      %1337 = vmatpush1.msra.mxu0 0.0
      %1338 = vmatprep.subr.mxu0 0.0
      %1339 = vmatpush1.msra.mxu0 0.0
      %1340 = vmatprep.subr.mxu0 0.0
      %1341 = vmatpush1.msra.mxu0 0.0
      %1342 = vmatprep.subr.mxu0 0.0
      %1343 = vmatpush1.msra.mxu0 0.0
      %1344 = vmatprep.subr.mxu0 0.0
      %1345 = vmatpush1.msra.mxu0 0.0
      %1346 = vmatprep.subr.mxu0 0.0
      %1347 = vmatpush1.msra.mxu0 0.0
      %1348 = vmatprep.subr.mxu0 0.0
      %1349 = vmatpush1.msra.mxu0 0.0
      %1350 = vmatprep.subr.mxu0 0.0
      %1351 = vmatpush1.msra.mxu0 0.0
      %1352 = vmatprep.subr.mxu0 0.0
      %1353 = vmatpush1.msra.mxu0 0.0
      %1354 = vmatprep.subr.mxu0 0.0
      %1355 = vmatpush1.msra.mxu0 0.0
      %1356 = vmatprep.subr.mxu0 0.0
      %1357 = vmatpush1.msra.mxu0 0.0
      %1358 = vmatprep.subr.mxu0 0.0
      %1359 = vmatpush1.msra.mxu0 0.0
      %1360 = vmatprep.subr.mxu0 0.0
      %1361 = vmatpush1.msra.mxu0 0.0
      %1362 = vmatprep.subr.mxu0 0.0
      %1363 = vmatpush1.msra.mxu0 0.0
      %1364 = vmatprep.subr.mxu0 0.0
      %1365 = vmatpush1.msra.mxu0 0.0
      %1366 = vmatprep.subr.mxu0 0.0
      %1367 = vmatpush1.msra.mxu0 0.0
      %1368 = vmatprep.subr.mxu0 0.0
      %1369 = vmatpush1.msra.mxu0 0.0
      %1370 = vmatprep.subr.mxu0 0.0
      %1371 = vmatpush1.msra.mxu0 0.0
      %1372 = vmatprep.subr.mxu0 0.0
      %1373 = vmatpush1.msra.mxu0 0.0
      %1374 = vmatprep.subr.mxu0 0.0
      %1375 = vmatpush1.msra.mxu0 0.0
      %1376 = vmatprep.subr.mxu0 0.0
      %1377 = vmatpush1.msra.mxu0 0.0
      %1378 = vmatprep.subr.mxu0 0.0
      %1379 = vmatpush1.msra.mxu0 0.0
      %1380 = vmatprep.mubr.f32.mxu0 0.0
      %1381 = vmatmul.mubr.f32.gmra.mrb[0].mxu0 %v735
      %v1382 = vpop.f32.mrb[0].mxu0
      %v1383 = vadd.f32 0.0, %v1382
      %v1384 = vpop.f32.mrb[0].mxu0
      %1385 = vmatprep.mubr.f32.mxu0 0.0
      %1386 = vmatmul.mubr.f32.gmra.mrb[0].mxu0 %v738
      %v1387 = vpop.f32.mrb[0].mxu0
      %v1388 = vadd.f32 0.0, %v1387
      %v1389 = vpop.f32.mrb[0].mxu0
      %1390 = vdwg.mxu0
      %v1392 = vsel %vm894, %v1213, 0
      %v1395 = vsel %vm894, %v1218, 0
      %v1398 = vsel %vm894, %v1223, 0
      %v1401 = vsel %vm894, %v1228, 0
      %v1404 = vsel %vm894, %v1303, 0
      %v1407 = vsel %vm894, %v1308, 0
      %1409 = vmatprep.subr.mxu0 0.0
      %1410 = vmatpush1.xpose.msra.mxu0 %v1404
      %1411 = vmatprep.subr.mxu0 0.0
      %1412 = vmatpush1.xpose.msra.mxu0 %v1407
      %1413 = vmatprep.subr.mxu0 0.0
      %1414 = vmatpush1.xpose.msra.mxu0 0.0
      %1415 = vmatprep.subr.mxu0 0.0
      %1416 = vmatpush1.xpose.msra.mxu0 0.0
      %1417 = vmatprep.subr.mxu0 0.0
      %1418 = vmatpush1.xpose.msra.mxu0 0.0
      %1419 = vmatprep.subr.mxu0 0.0
      %1420 = vmatpush1.xpose.msra.mxu0 0.0
      %1421 = vmatprep.subr.mxu0 0.0
      %1422 = vmatpush1.xpose.msra.mxu0 0.0
      %1423 = vmatprep.subr.mxu0 0.0
      %1424 = vmatpush1.xpose.msra.mxu0 0.0
      %1425 = vmatprep.subr.mxu0 0.0
      %1426 = vmatpush1.xpose.msra.mxu0 0.0
      %1427 = vmatprep.subr.mxu0 0.0
      %1428 = vmatpush1.xpose.msra.mxu0 0.0
      %1429 = vmatprep.subr.mxu0 0.0
      %1430 = vmatpush1.xpose.msra.mxu0 0.0
      %1431 = vmatprep.subr.mxu0 0.0
      %1432 = vmatpush1.xpose.msra.mxu0 0.0
      %1433 = vmatprep.subr.mxu0 0.0
      %1434 = vmatpush1.xpose.msra.mxu0 0.0
      %1435 = vmatprep.subr.mxu0 0.0
      %1436 = vmatpush1.xpose.msra.mxu0 0.0
      %1437 = vmatprep.subr.mxu0 0.0
      %1438 = vmatpush1.xpose.msra.mxu0 0.0
      %1439 = vmatprep.subr.mxu0 0.0
      %1440 = vmatpush1.xpose.msra.mxu0 0.0
      %1441 = vmatprep.subr.mxu0 0.0
      %1442 = vmatpush1.xpose.msra.mxu0 0.0
      %1443 = vmatprep.subr.mxu0 0.0
      %1444 = vmatpush1.xpose.msra.mxu0 0.0
      %1445 = vmatprep.subr.mxu0 0.0
      %1446 = vmatpush1.xpose.msra.mxu0 0.0
      %1447 = vmatprep.subr.mxu0 0.0
      %1448 = vmatpush1.xpose.msra.mxu0 0.0
      %1449 = vmatprep.subr.mxu0 0.0
      %1450 = vmatpush1.xpose.msra.mxu0 0.0
      %1451 = vmatprep.subr.mxu0 0.0
      %1452 = vmatpush1.xpose.msra.mxu0 0.0
      %1453 = vmatprep.subr.mxu0 0.0
      %1454 = vmatpush1.xpose.msra.mxu0 0.0
      %1455 = vmatprep.subr.mxu0 0.0
      %1456 = vmatpush1.xpose.msra.mxu0 0.0
      %1457 = vmatprep.subr.mxu0 0.0
      %1458 = vmatpush1.xpose.msra.mxu0 0.0
      %1459 = vmatprep.subr.mxu0 0.0
      %1460 = vmatpush1.xpose.msra.mxu0 0.0
      %1461 = vmatprep.subr.mxu0 0.0
      %1462 = vmatpush1.xpose.msra.mxu0 0.0
      %1463 = vmatprep.subr.mxu0 0.0
      %1464 = vmatpush1.xpose.msra.mxu0 0.0
      %1465 = vmatprep.subr.mxu0 0.0
      %1466 = vmatpush1.xpose.msra.mxu0 0.0
      %1467 = vmatprep.subr.mxu0 0.0
      %1468 = vmatpush1.xpose.msra.mxu0 0.0
      %1469 = vmatprep.subr.mxu0 0.0
      %1470 = vmatpush1.xpose.msra.mxu0 0.0
      %1471 = vmatprep.subr.mxu0 0.0
      %1472 = vmatpush1.xpose.msra.mxu0 0.0
      %1473 = vmatprep.mubr.f32.mxu0 0.0
      %1474 = vmatmul.mubr.f32.gmra.mrb[0].mxu0 %v1392
      %v1475 = vpop.f32.mrb[0].mxu0
      %v1476 = vadd.f32 %v624, %v1475
      %v1477 = vpop.f32.mrb[0].mxu0
      %1478 = vmatprep.mubr.f32.mxu0 0.0
      %1479 = vmatmul.mubr.f32.gmra.mrb[0].mxu0 %v1395
      %v1480 = vpop.f32.mrb[0].mxu0
      %v1481 = vadd.f32 %v625, %v1480
      %v1482 = vpop.f32.mrb[0].mxu0
      %1483 = vmatprep.mubr.f32.mxu0 0.0
      %1484 = vmatmul.mubr.f32.gmra.mrb[0].mxu0 %v1398
      %v1485 = vpop.f32.mrb[0].mxu0
      %v1486 = vadd.f32 %v626, %v1485
      %v1487 = vpop.f32.mrb[0].mxu0
      %1488 = vmatprep.mubr.f32.mxu0 0.0
      %1489 = vmatmul.mubr.f32.gmra.mrb[0].mxu0 %v1401
      %v1490 = vpop.f32.mrb[0].mxu0
      %v1491 = vadd.f32 %v627, %v1490
      %v1492 = vpop.f32.mrb[0].mxu0
      %1493 = vdwg.mxu0
      %v1494 = vsel %vm894, %v1476, -inf
      %1495 = vmax.xlane.f32.xlu0 %v1494
      %v1496 = vpop.xlane.xlu0 %1495
      %v1497 = vsel %vm894, %v1481, -inf
      %1498 = vmax.xlane.f32.xlu0 %v1497
      %v1499 = vpop.xlane.xlu0 %1498
      %v1500 = vsel %vm894, %v1486, -inf
      %1501 = vmax.xlane.f32.xlu0 %v1500
      %v1502 = vpop.xlane.xlu0 %1501
      %v1503 = vsel %vm894, %v1491, -inf
      %1504 = vmax.xlane.f32.xlu0 %v1503
      %v1505 = vpop.xlane.xlu0 %1504
      %v1506 = vsub.f32 %v1476, %v1496
      %v1507 = vsub.f32 %v1481, %v1499
      %v1508 = vsub.f32 %v1486, %v1502
      %v1509 = vsub.f32 %v1491, %v1505
      %v1510 = vmul.f32 %v1506, 1.442695
      %v1511 = vpow.pop %v1510
      %v1512 = vmul.f32 %v1507, 1.442695
      %v1513 = vpow.pop %v1512
      %v1514 = vmul.f32 %v1508, 1.442695
      %v1515 = vpow.pop %v1514
      %v1516 = vmul.f32 %v1509, 1.442695
      %v1517 = vpow.pop %v1516
      %v1518 = vsel %vm894, %v1511, 0.0
      %1519 = vadd.xlane.f32.xlu0 %v1518
      %v1520 = vpop.xlane.xlu0 %1519
      %v1521 = vsel %vm894, %v1513, 0.0
      %1522 = vadd.xlane.f32.xlu0 %v1521
      %v1523 = vpop.xlane.xlu0 %1522
      %v1524 = vsel %vm894, %v1515, 0.0
      %1525 = vadd.xlane.f32.xlu0 %v1524
      %v1526 = vpop.xlane.xlu0 %1525
      %v1527 = vsel %vm894, %v1517, 0.0
      %1528 = vadd.xlane.f32.xlu0 %v1527
      %v1529 = vpop.xlane.xlu0 %1528
      %v1530 = vrcp.pop %v1520
      %v1531 = vrcp.pop %v1523
      %v1532 = vrcp.pop %v1526
      %v1533 = vrcp.pop %v1529
      %v1535 = vsel %vm894, %v1511, 0
      %v1538 = vsel %vm894, %v1513, 0
      %v1541 = vsel %vm894, %v1515, 0
      %v1544 = vsel %vm894, %v1517, 0
      %1546 = vmatprep.subr.mxu0 0.0
      %1547 = vmatpush1.msra.mxu0 %v1383
      %1548 = vmatprep.subr.mxu0 0.0
      %1549 = vmatpush1.msra.mxu0 %v1388
      %1550 = vmatprep.subr.mxu0 0.0
      %1551 = vmatpush1.msra.mxu0 0.0
      %1552 = vmatprep.subr.mxu0 0.0
      %1553 = vmatpush1.msra.mxu0 0.0
      %1554 = vmatprep.subr.mxu0 0.0
      %1555 = vmatpush1.msra.mxu0 0.0
      %1556 = vmatprep.subr.mxu0 0.0
      %1557 = vmatpush1.msra.mxu0 0.0
      %1558 = vmatprep.subr.mxu0 0.0
      %1559 = vmatpush1.msra.mxu0 0.0
      %1560 = vmatprep.subr.mxu0 0.0
      %1561 = vmatpush1.msra.mxu0 0.0
      %1562 = vmatprep.subr.mxu0 0.0
      %1563 = vmatpush1.msra.mxu0 0.0
      %1564 = vmatprep.subr.mxu0 0.0
      %1565 = vmatpush1.msra.mxu0 0.0
      %1566 = vmatprep.subr.mxu0 0.0
      %1567 = vmatpush1.msra.mxu0 0.0
      %1568 = vmatprep.subr.mxu0 0.0
      %1569 = vmatpush1.msra.mxu0 0.0
      %1570 = vmatprep.subr.mxu0 0.0
      %1571 = vmatpush1.msra.mxu0 0.0
      %1572 = vmatprep.subr.mxu0 0.0
      %1573 = vmatpush1.msra.mxu0 0.0
      %1574 = vmatprep.subr.mxu0 0.0
      %1575 = vmatpush1.msra.mxu0 0.0
      %1576 = vmatprep.subr.mxu0 0.0
      %1577 = vmatpush1.msra.mxu0 0.0
      %1578 = vmatprep.subr.mxu0 0.0
      %1579 = vmatpush1.msra.mxu0 0.0
      %1580 = vmatprep.subr.mxu0 0.0
      %1581 = vmatpush1.msra.mxu0 0.0
      %1582 = vmatprep.subr.mxu0 0.0
      %1583 = vmatpush1.msra.mxu0 0.0
      %1584 = vmatprep.subr.mxu0 0.0
      %1585 = vmatpush1.msra.mxu0 0.0
      %1586 = vmatprep.subr.mxu0 0.0
      %1587 = vmatpush1.msra.mxu0 0.0
      %1588 = vmatprep.subr.mxu0 0.0
      %1589 = vmatpush1.msra.mxu0 0.0
      %1590 = vmatprep.subr.mxu0 0.0
      %1591 = vmatpush1.msra.mxu0 0.0
      %1592 = vmatprep.subr.mxu0 0.0
      %1593 = vmatpush1.msra.mxu0 0.0
      %1594 = vmatprep.subr.mxu0 0.0
      %1595 = vmatpush1.msra.mxu0 0.0
      %1596 = vmatprep.subr.mxu0 0.0
      %1597 = vmatpush1.msra.mxu0 0.0
      %1598 = vmatprep.subr.mxu0 0.0
      %1599 = vmatpush1.msra.mxu0 0.0
      %1600 = vmatprep.subr.mxu0 0.0
      %1601 = vmatpush1.msra.mxu0 0.0
      %1602 = vmatprep.subr.mxu0 0.0
      %1603 = vmatpush1.msra.mxu0 0.0
      %1604 = vmatprep.subr.mxu0 0.0
      %1605 = vmatpush1.msra.mxu0 0.0
      %1606 = vmatprep.subr.mxu0 0.0
      %1607 = vmatpush1.msra.mxu0 0.0
      %1608 = vmatprep.subr.mxu0 0.0
      %1609 = vmatpush1.msra.mxu0 0.0
      %1610 = vmatprep.mubr.f32.mxu0 0.0
      %1611 = vmatmul.mubr.f32.gmra.mrb[0].mxu0 %v1535
      %v1612 = vpop.f32.mrb[0].mxu0
      %v1613 = vadd.f32 0.0, %v1612
      %v1614 = vpop.f32.mrb[0].mxu0
      %1615 = vmatprep.mubr.f32.mxu0 0.0
      %1616 = vmatmul.mubr.f32.gmra.mrb[0].mxu0 %v1538
      %v1617 = vpop.f32.mrb[0].mxu0
      %v1618 = vadd.f32 0.0, %v1617
      %v1619 = vpop.f32.mrb[0].mxu0
      %1620 = vmatprep.mubr.f32.mxu0 0.0
      %1621 = vmatmul.mubr.f32.gmra.mrb[0].mxu0 %v1541
      %v1622 = vpop.f32.mrb[0].mxu0
      %v1623 = vadd.f32 0.0, %v1622
      %v1624 = vpop.f32.mrb[0].mxu0
      %1625 = vmatprep.mubr.f32.mxu0 0.0
      %1626 = vmatmul.mubr.f32.gmra.mrb[0].mxu0 %v1544
      %v1627 = vpop.f32.mrb[0].mxu0
      %v1628 = vadd.f32 0.0, %v1627
      %v1629 = vpop.f32.mrb[0].mxu0
      %1630 = vdwg.mxu0
      %v1631 = vmul.f32 %v1613, %v1530
      %v1632 = vmul.f32 %v1618, %v1531
      %v1633 = vmul.f32 %v1623, %v1532
      %v1634 = vmul.f32 %v1628, %v1533
      %s1635 = scalar_lea.vmem %s8, 16
      %v1636 = vld [vmem:[%s1635] sm:$0xff]
      %v1637 = vld [vmem:[%s1635 + $0x8] sm:$0xff]
      %v1639 = vsel %vm894, %v1631, 0
      %v1642 = vsel %vm894, %v1632, 0
      %v1645 = vsel %vm894, %v1633, 0
      %v1648 = vsel %vm894, %v1634, 0
      %1650 = vmatprep.subr.mxu0 0.0
      %1651 = vmatpush1.msra.mxu0 %v1636
      %1652 = vmatprep.subr.mxu0 0.0
      %1653 = vmatpush1.msra.mxu0 %v1637
      %1654 = vmatprep.subr.mxu0 0.0
      %1655 = vmatpush1.msra.mxu0 0.0
      %1656 = vmatprep.subr.mxu0 0.0
      %1657 = vmatpush1.msra.mxu0 0.0
      %1658 = vmatprep.subr.mxu0 0.0
      %1659 = vmatpush1.msra.mxu0 0.0
      %1660 = vmatprep.subr.mxu0 0.0
      %1661 = vmatpush1.msra.mxu0 0.0
      %1662 = vmatprep.subr.mxu0 0.0
      %1663 = vmatpush1.msra.mxu0 0.0
      %1664 = vmatprep.subr.mxu0 0.0
      %1665 = vmatpush1.msra.mxu0 0.0
      %1666 = vmatprep.subr.mxu0 0.0
      %1667 = vmatpush1.msra.mxu0 0.0
      %1668 = vmatprep.subr.mxu0 0.0
      %1669 = vmatpush1.msra.mxu0 0.0
      %1670 = vmatprep.subr.mxu0 0.0
      %1671 = vmatpush1.msra.mxu0 0.0
      %1672 = vmatprep.subr.mxu0 0.0
      %1673 = vmatpush1.msra.mxu0 0.0
      %1674 = vmatprep.subr.mxu0 0.0
      %1675 = vmatpush1.msra.mxu0 0.0
      %1676 = vmatprep.subr.mxu0 0.0
      %1677 = vmatpush1.msra.mxu0 0.0
      %1678 = vmatprep.subr.mxu0 0.0
      %1679 = vmatpush1.msra.mxu0 0.0
      %1680 = vmatprep.subr.mxu0 0.0
      %1681 = vmatpush1.msra.mxu0 0.0
      %1682 = vmatprep.subr.mxu0 0.0
      %1683 = vmatpush1.msra.mxu0 0.0
      %1684 = vmatprep.subr.mxu0 0.0
      %1685 = vmatpush1.msra.mxu0 0.0
      %1686 = vmatprep.subr.mxu0 0.0
      %1687 = vmatpush1.msra.mxu0 0.0
      %1688 = vmatprep.subr.mxu0 0.0
      %1689 = vmatpush1.msra.mxu0 0.0
      %1690 = vmatprep.subr.mxu0 0.0
      %1691 = vmatpush1.msra.mxu0 0.0
      %1692 = vmatprep.subr.mxu0 0.0
      %1693 = vmatpush1.msra.mxu0 0.0
      %1694 = vmatprep.subr.mxu0 0.0
      %1695 = vmatpush1.msra.mxu0 0.0
      %1696 = vmatprep.subr.mxu0 0.0
      %1697 = vmatpush1.msra.mxu0 0.0
      %1698 = vmatprep.subr.mxu0 0.0
      %1699 = vmatpush1.msra.mxu0 0.0
      %1700 = vmatprep.subr.mxu0 0.0
      %1701 = vmatpush1.msra.mxu0 0.0
      %1702 = vmatprep.subr.mxu0 0.0
      %1703 = vmatpush1.msra.mxu0 0.0
      %1704 = vmatprep.subr.mxu0 0.0
      %1705 = vmatpush1.msra.mxu0 0.0
      %1706 = vmatprep.subr.mxu0 0.0
      %1707 = vmatpush1.msra.mxu0 0.0
      %1708 = vmatprep.subr.mxu0 0.0
      %1709 = vmatpush1.msra.mxu0 0.0
      %1710 = vmatprep.subr.mxu0 0.0
      %1711 = vmatpush1.msra.mxu0 0.0
      %1712 = vmatprep.subr.mxu0 0.0
      %1713 = vmatpush1.msra.mxu0 0.0
      %1714 = vmatprep.mubr.f32.mxu0 0.0
      %1715 = vmatmul.mubr.f32.gmra.mrb[0].mxu0 %v1639
      %v1716 = vpop.f32.mrb[0].mxu0
      %v1717 = vadd.f32 0.0, %v1716
      %v1718 = vpop.f32.mrb[0].mxu0
      %1719 = vmatprep.mubr.f32.mxu0 0.0
      %1720 = vmatmul.mubr.f32.gmra.mrb[0].mxu0 %v1642
      %v1721 = vpop.f32.mrb[0].mxu0
      %v1722 = vadd.f32 0.0, %v1721
      %v1723 = vpop.f32.mrb[0].mxu0
      %1724 = vmatprep.mubr.f32.mxu0 0.0
      %1725 = vmatmul.mubr.f32.gmra.mrb[0].mxu0 %v1645
      %v1726 = vpop.f32.mrb[0].mxu0
      %v1727 = vadd.f32 0.0, %v1726
      %v1728 = vpop.f32.mrb[0].mxu0
      %1729 = vmatprep.mubr.f32.mxu0 0.0
      %1730 = vmatmul.mubr.f32.gmra.mrb[0].mxu0 %v1648
      %v1731 = vpop.f32.mrb[0].mxu0
      %v1732 = vadd.f32 0.0, %v1731
      %v1733 = vpop.f32.mrb[0].mxu0
      %1734 = vdwg.mxu0
      %v1736 = vsel %vm894, %v1135, 0
      %v1739 = vsel %vm894, %v1136, 0
      %v1742 = vsel %vm894, %v1137, 0
      %v1745 = vsel %vm894, %v1138, 0
      %1747 = vmatprep.subr.mxu0 0.0
      %1748 = vmatpush1.msra.mxu0 %v1139
      %1749 = vmatprep.subr.mxu0 0.0
      %1750 = vmatpush1.msra.mxu0 %v1140
      %1751 = vmatprep.subr.mxu0 0.0
      %1752 = vmatpush1.msra.mxu0 0.0
      %1753 = vmatprep.subr.mxu0 0.0
      %1754 = vmatpush1.msra.mxu0 0.0
      %1755 = vmatprep.subr.mxu0 0.0
      %1756 = vmatpush1.msra.mxu0 0.0
      %1757 = vmatprep.subr.mxu0 0.0
      %1758 = vmatpush1.msra.mxu0 0.0
      %1759 = vmatprep.subr.mxu0 0.0
      %1760 = vmatpush1.msra.mxu0 0.0
      %1761 = vmatprep.subr.mxu0 0.0
      %1762 = vmatpush1.msra.mxu0 0.0
      %1763 = vmatprep.subr.mxu0 0.0
      %1764 = vmatpush1.msra.mxu0 0.0
      %1765 = vmatprep.subr.mxu0 0.0
      %1766 = vmatpush1.msra.mxu0 0.0
      %1767 = vmatprep.subr.mxu0 0.0
      %1768 = vmatpush1.msra.mxu0 0.0
      %1769 = vmatprep.subr.mxu0 0.0
      %1770 = vmatpush1.msra.mxu0 0.0
      %1771 = vmatprep.subr.mxu0 0.0
      %1772 = vmatpush1.msra.mxu0 0.0
      %1773 = vmatprep.subr.mxu0 0.0
      %1774 = vmatpush1.msra.mxu0 0.0
      %1775 = vmatprep.subr.mxu0 0.0
      %1776 = vmatpush1.msra.mxu0 0.0
      %1777 = vmatprep.subr.mxu0 0.0
      %1778 = vmatpush1.msra.mxu0 0.0
      %1779 = vmatprep.subr.mxu0 0.0
      %1780 = vmatpush1.msra.mxu0 0.0
      %1781 = vmatprep.subr.mxu0 0.0
      %1782 = vmatpush1.msra.mxu0 0.0
      %1783 = vmatprep.subr.mxu0 0.0
      %1784 = vmatpush1.msra.mxu0 0.0
      %1785 = vmatprep.subr.mxu0 0.0
      %1786 = vmatpush1.msra.mxu0 0.0
      %1787 = vmatprep.subr.mxu0 0.0
      %1788 = vmatpush1.msra.mxu0 0.0
      %1789 = vmatprep.subr.mxu0 0.0
      %1790 = vmatpush1.msra.mxu0 0.0
      %1791 = vmatprep.subr.mxu0 0.0
      %1792 = vmatpush1.msra.mxu0 0.0
      %1793 = vmatprep.subr.mxu0 0.0
      %1794 = vmatpush1.msra.mxu0 0.0
      %1795 = vmatprep.subr.mxu0 0.0
      %1796 = vmatpush1.msra.mxu0 0.0
      %1797 = vmatprep.subr.mxu0 0.0
      %1798 = vmatpush1.msra.mxu0 0.0
      %1799 = vmatprep.subr.mxu0 0.0
      %1800 = vmatpush1.msra.mxu0 0.0
      %1801 = vmatprep.subr.mxu0 0.0
      %1802 = vmatpush1.msra.mxu0 0.0
      %1803 = vmatprep.subr.mxu0 0.0
      %1804 = vmatpush1.msra.mxu0 0.0
      %1805 = vmatprep.subr.mxu0 0.0
      %1806 = vmatpush1.msra.mxu0 0.0
      %1807 = vmatprep.subr.mxu0 0.0
      %1808 = vmatpush1.msra.mxu0 0.0
      %1809 = vmatprep.subr.mxu0 0.0
      %1810 = vmatpush1.msra.mxu0 0.0
      %1811 = vmatprep.mubr.f32.mxu0 0.0
      %1812 = vmatmul.mubr.f32.gmra.mrb[0].mxu0 %v1736
      %v1813 = vpop.f32.mrb[0].mxu0
      %v1814 = vadd.f32 %v1717, %v1813
      %v1815 = vpop.f32.mrb[0].mxu0
      %1816 = vmatprep.mubr.f32.mxu0 0.0
      %1817 = vmatmul.mubr.f32.gmra.mrb[0].mxu0 %v1739
      %v1818 = vpop.f32.mrb[0].mxu0
      %v1819 = vadd.f32 %v1722, %v1818
      %v1820 = vpop.f32.mrb[0].mxu0
      %1821 = vmatprep.mubr.f32.mxu0 0.0
      %1822 = vmatmul.mubr.f32.gmra.mrb[0].mxu0 %v1742
      %v1823 = vpop.f32.mrb[0].mxu0
      %v1824 = vadd.f32 %v1727, %v1823
      %v1825 = vpop.f32.mrb[0].mxu0
      %1826 = vmatprep.mubr.f32.mxu0 0.0
      %1827 = vmatmul.mubr.f32.gmra.mrb[0].mxu0 %v1745
      %v1828 = vpop.f32.mrb[0].mxu0
      %v1829 = vadd.f32 %v1732, %v1828
      %v1830 = vpop.f32.mrb[0].mxu0
      %1831 = vdwg.mxu0
      %v1832 = vadd.f32 %v1814, %v618
      %v1833 = vadd.f32 %v1819, %v619
      %v1834 = vadd.f32 %v1824, %v620
      %v1835 = vadd.f32 %v1829, %v621
      %v1836 = vld [vmem:[%s13] sm:$0x1]
      %v1837 = vld [vmem:[%s14] sm:$0x1]
      %v1838 = vsel %vm632, %v1832, 0.0
      %1839 = vadd.xlane.f32.xlu0 %v1838
      %v1840 = vpop.xlane.xlu0 %1839
      %v1841 = vsel %vm632, %v1833, 0.0
      %1842 = vadd.xlane.f32.xlu0 %v1841
      %v1843 = vpop.xlane.xlu0 %1842
      %v1844 = vsel %vm632, %v1834, 0.0
      %1845 = vadd.xlane.f32.xlu0 %v1844
      %v1846 = vpop.xlane.xlu0 %1845
      %v1847 = vsel %vm632, %v1835, 0.0
      %1848 = vadd.xlane.f32.xlu0 %v1847
      %v1849 = vpop.xlane.xlu0 %1848
      %v1850 = vrcp.pop 32.0
      %v1851 = vmul.f32 %v1840, %v1850
      %v1852 = vmul.f32 %v1843, %v1850
      %v1853 = vmul.f32 %v1846, %v1850
      %v1854 = vmul.f32 %v1849, %v1850
      %v1855 = vsub.f32 %v1832, %v1851
      %v1856 = vsub.f32 %v1833, %v1852
      %v1857 = vsub.f32 %v1834, %v1853
      %v1858 = vsub.f32 %v1835, %v1854
      %v1859 = vmul.f32 %v1855, %v1855
      %v1860 = vmul.f32 %v1856, %v1856
      %v1861 = vmul.f32 %v1857, %v1857
      %v1862 = vmul.f32 %v1858, %v1858
      %v1863 = vsel %vm632, %v1859, 0.0
      %1864 = vadd.xlane.f32.xlu0 %v1863
      %v1865 = vpop.xlane.xlu0 %1864
      %v1866 = vsel %vm632, %v1860, 0.0
      %1867 = vadd.xlane.f32.xlu0 %v1866
      %v1868 = vpop.xlane.xlu0 %1867
      %v1869 = vsel %vm632, %v1861, 0.0
      %1870 = vadd.xlane.f32.xlu0 %v1869
      %v1871 = vpop.xlane.xlu0 %1870
      %v1872 = vsel %vm632, %v1862, 0.0
      %1873 = vadd.xlane.f32.xlu0 %v1872
      %v1874 = vpop.xlane.xlu0 %1873
      %v1875 = vmul.f32 %v1865, %v1850
      %v1876 = vmul.f32 %v1868, %v1850
      %v1877 = vmul.f32 %v1871, %v1850
      %v1878 = vmul.f32 %v1874, %v1850
      %v1879 = vadd.f32 %v1875, 1e-05
      %v1880 = vadd.f32 %v1876, 1e-05
      %v1881 = vadd.f32 %v1877, 1e-05
      %v1882 = vadd.f32 %v1878, 1e-05
      %v1883 = vrsqrt.pop %v1879
      %v1884 = vrsqrt.pop %v1880
      %v1885 = vrsqrt.pop %v1881
      %v1886 = vrsqrt.pop %v1882
      %v1887 = vmul.f32 %v1855, %v1883
      %v1888 = vmul.f32 %v1856, %v1884
      %v1889 = vmul.f32 %v1857, %v1885
      %v1890 = vmul.f32 %v1858, %v1886
      %v1892 = vlaneseq
      %v1893 = vshrl.u32 %v1892, 7
      %v1894 = vsub.s32 0, %v1893
      %v1895 = vrot.slane %v1836, %v1894
      %v1897 = vmul.f32 %v1887, %v1895
      %v1898 = vmul.f32 %v1888, %v1895
      %v1899 = vmul.f32 %v1889, %v1895
      %v1900 = vmul.f32 %v1890, %v1895
      %v1902 = vlaneseq
      %v1903 = vshrl.u32 %v1902, 7
      %v1904 = vsub.s32 0, %v1903
      %v1905 = vrot.slane %v1837, %v1904
      %v1907 = vadd.f32 %v1897, %v1905
      %v1908 = vadd.f32 %v1898, %v1905
      %v1909 = vadd.f32 %v1899, %v1905
      %v1910 = vadd.f32 %v1900, %v1905
      %v1911 = vld [vmem:[%s9] sm:$0xff]
      %v1912 = vld [vmem:[%s9 + $0x8] sm:$0xff]
      %v1913 = vld [vmem:[%s9 + $0x10] sm:$0xff]
      %v1914 = vld [vmem:[%s9 + $0x18] sm:$0xff]
      %v1915 = vld [vmem:[%s10] sm:$0x1]
      %v1917 = vlaneseq
      %v1918 = vshrl.u32 %v1917, 7
      %v1919 = vsub.s32 0, %v1918
      %v1920 = vrot.slane %v1915, %v1919
      %v1923 = vsel %vm632, %v1907, 0
      %v1926 = vsel %vm632, %v1908, 0
      %v1929 = vsel %vm632, %v1909, 0
      %v1932 = vsel %vm632, %v1910, 0
      %1934 = vmatprep.subr.mxu0 0.0
      %1935 = vmatpush1.msra.mxu0 %v1911
      %1936 = vmatprep.subr.mxu0 0.0
      %1937 = vmatpush1.msra.mxu0 %v1912
      %1938 = vmatprep.subr.mxu0 0.0
      %1939 = vmatpush1.msra.mxu0 %v1913
      %1940 = vmatprep.subr.mxu0 0.0
      %1941 = vmatpush1.msra.mxu0 %v1914
      %1942 = vmatprep.subr.mxu0 0.0
      %1943 = vmatpush1.msra.mxu0 0.0
      %1944 = vmatprep.subr.mxu0 0.0
      %1945 = vmatpush1.msra.mxu0 0.0
      %1946 = vmatprep.subr.mxu0 0.0
      %1947 = vmatpush1.msra.mxu0 0.0
      %1948 = vmatprep.subr.mxu0 0.0
      %1949 = vmatpush1.msra.mxu0 0.0
      %1950 = vmatprep.subr.mxu0 0.0
      %1951 = vmatpush1.msra.mxu0 0.0
      %1952 = vmatprep.subr.mxu0 0.0
      %1953 = vmatpush1.msra.mxu0 0.0
      %1954 = vmatprep.subr.mxu0 0.0
      %1955 = vmatpush1.msra.mxu0 0.0
      %1956 = vmatprep.subr.mxu0 0.0
      %1957 = vmatpush1.msra.mxu0 0.0
      %1958 = vmatprep.subr.mxu0 0.0
      %1959 = vmatpush1.msra.mxu0 0.0
      %1960 = vmatprep.subr.mxu0 0.0
      %1961 = vmatpush1.msra.mxu0 0.0
      %1962 = vmatprep.subr.mxu0 0.0
      %1963 = vmatpush1.msra.mxu0 0.0
      %1964 = vmatprep.subr.mxu0 0.0
      %1965 = vmatpush1.msra.mxu0 0.0
      %1966 = vmatprep.subr.mxu0 0.0
      %1967 = vmatpush1.msra.mxu0 0.0
      %1968 = vmatprep.subr.mxu0 0.0
      %1969 = vmatpush1.msra.mxu0 0.0
      %1970 = vmatprep.subr.mxu0 0.0
      %1971 = vmatpush1.msra.mxu0 0.0
      %1972 = vmatprep.subr.mxu0 0.0
      %1973 = vmatpush1.msra.mxu0 0.0
      %1974 = vmatprep.subr.mxu0 0.0
      %1975 = vmatpush1.msra.mxu0 0.0
      %1976 = vmatprep.subr.mxu0 0.0
      %1977 = vmatpush1.msra.mxu0 0.0
      %1978 = vmatprep.subr.mxu0 0.0
      %1979 = vmatpush1.msra.mxu0 0.0
      %1980 = vmatprep.subr.mxu0 0.0
      %1981 = vmatpush1.msra.mxu0 0.0
      %1982 = vmatprep.subr.mxu0 0.0
      %1983 = vmatpush1.msra.mxu0 0.0
      %1984 = vmatprep.subr.mxu0 0.0
      %1985 = vmatpush1.msra.mxu0 0.0
      %1986 = vmatprep.subr.mxu0 0.0
      %1987 = vmatpush1.msra.mxu0 0.0
      %1988 = vmatprep.subr.mxu0 0.0
      %1989 = vmatpush1.msra.mxu0 0.0
      %1990 = vmatprep.subr.mxu0 0.0
      %1991 = vmatpush1.msra.mxu0 0.0
      %1992 = vmatprep.subr.mxu0 0.0
      %1993 = vmatpush1.msra.mxu0 0.0
      %1994 = vmatprep.subr.mxu0 0.0
      %1995 = vmatpush1.msra.mxu0 0.0
      %1996 = vmatprep.subr.mxu0 0.0
      %1997 = vmatpush1.msra.mxu0 0.0
      %1998 = vmatprep.mubr.f32.mxu0 0.0
      %1999 = vmatmul.mubr.f32.gmra.mrb[0].mxu0 %v1923
      %v2000 = vpop.f32.mrb[0].mxu0
      %v2001 = vadd.f32 %v1920, %v2000
      %v2002 = vpop.f32.mrb[0].mxu0
      %2003 = vmatprep.mubr.f32.mxu0 0.0
      %2004 = vmatmul.mubr.f32.gmra.mrb[0].mxu0 %v1926
      %v2005 = vpop.f32.mrb[0].mxu0
      %v2006 = vadd.f32 %v1920, %v2005
      %v2007 = vpop.f32.mrb[0].mxu0
      %2008 = vmatprep.mubr.f32.mxu0 0.0
      %2009 = vmatmul.mubr.f32.gmra.mrb[0].mxu0 %v1929
      %v2010 = vpop.f32.mrb[0].mxu0
      %v2011 = vadd.f32 %v1920, %v2010
      %v2012 = vpop.f32.mrb[0].mxu0
      %2013 = vmatprep.mubr.f32.mxu0 0.0
      %2014 = vmatmul.mubr.f32.gmra.mrb[0].mxu0 %v1932
      %v2015 = vpop.f32.mrb[0].mxu0
      %v2016 = vadd.f32 %v1920, %v2015
      %v2017 = vpop.f32.mrb[0].mxu0
      %2018 = vdwg.mxu0
      %v2019 = vmax.f32 %v2001, 0.0
      %v2020 = vmax.f32 %v2006, 0.0
      %v2021 = vmax.f32 %v2011, 0.0
      %v2022 = vmax.f32 %v2016, 0.0
      %v2023 = vld [vmem:[%s11] sm:$0xff]
      %v2024 = vld [vmem:[%s11 + $0x8] sm:$0xff]
      %v2025 = vld [vmem:[%s11 + $0x10] sm:$0xff]
      %v2026 = vld [vmem:[%s11 + $0x18] sm:$0xff]
      %v2027 = vld [vmem:[%s12] sm:$0x1]
      %v2029 = vlaneseq
      %v2030 = vshrl.u32 %v2029, 7
      %v2031 = vsub.s32 0, %v2030
      %v2032 = vrot.slane %v2027, %v2031
      %v2035 = vsel %vm632, %v2019, 0
      %v2038 = vsel %vm632, %v2020, 0
      %v2041 = vsel %vm632, %v2021, 0
      %v2044 = vsel %vm632, %v2022, 0
      %2046 = vmatprep.subr.mxu0 0.0
      %2047 = vmatpush1.msra.mxu0 %v2023
      %2048 = vmatprep.subr.mxu0 0.0
      %2049 = vmatpush1.msra.mxu0 %v2024
      %2050 = vmatprep.subr.mxu0 0.0
      %2051 = vmatpush1.msra.mxu0 %v2025
      %2052 = vmatprep.subr.mxu0 0.0
      %2053 = vmatpush1.msra.mxu0 %v2026
      %2054 = vmatprep.subr.mxu0 0.0
      %2055 = vmatpush1.msra.mxu0 0.0
      %2056 = vmatprep.subr.mxu0 0.0
      %2057 = vmatpush1.msra.mxu0 0.0
      %2058 = vmatprep.subr.mxu0 0.0
      %2059 = vmatpush1.msra.mxu0 0.0
      %2060 = vmatprep.subr.mxu0 0.0
      %2061 = vmatpush1.msra.mxu0 0.0
      %2062 = vmatprep.subr.mxu0 0.0
      %2063 = vmatpush1.msra.mxu0 0.0
      %2064 = vmatprep.subr.mxu0 0.0
      %2065 = vmatpush1.msra.mxu0 0.0
      %2066 = vmatprep.subr.mxu0 0.0
      %2067 = vmatpush1.msra.mxu0 0.0
      %2068 = vmatprep.subr.mxu0 0.0
      %2069 = vmatpush1.msra.mxu0 0.0
      %2070 = vmatprep.subr.mxu0 0.0
      %2071 = vmatpush1.msra.mxu0 0.0
      %2072 = vmatprep.subr.mxu0 0.0
      %2073 = vmatpush1.msra.mxu0 0.0
      %2074 = vmatprep.subr.mxu0 0.0
      %2075 = vmatpush1.msra.mxu0 0.0
      %2076 = vmatprep.subr.mxu0 0.0
      %2077 = vmatpush1.msra.mxu0 0.0
      %2078 = vmatprep.subr.mxu0 0.0
      %2079 = vmatpush1.msra.mxu0 0.0
      %2080 = vmatprep.subr.mxu0 0.0
      %2081 = vmatpush1.msra.mxu0 0.0
      %2082 = vmatprep.subr.mxu0 0.0
      %2083 = vmatpush1.msra.mxu0 0.0
      %2084 = vmatprep.subr.mxu0 0.0
      %2085 = vmatpush1.msra.mxu0 0.0
      %2086 = vmatprep.subr.mxu0 0.0
      %2087 = vmatpush1.msra.mxu0 0.0
      %2088 = vmatprep.subr.mxu0 0.0
      %2089 = vmatpush1.msra.mxu0 0.0
      %2090 = vmatprep.subr.mxu0 0.0
      %2091 = vmatpush1.msra.mxu0 0.0
      %2092 = vmatprep.subr.mxu0 0.0
      %2093 = vmatpush1.msra.mxu0 0.0
      %2094 = vmatprep.subr.mxu0 0.0
      %2095 = vmatpush1.msra.mxu0 0.0
      %2096 = vmatprep.subr.mxu0 0.0
      %2097 = vmatpush1.msra.mxu0 0.0
      %2098 = vmatprep.subr.mxu0 0.0
      %2099 = vmatpush1.msra.mxu0 0.0
      %2100 = vmatprep.subr.mxu0 0.0
      %2101 = vmatpush1.msra.mxu0 0.0
      %2102 = vmatprep.subr.mxu0 0.0
      %2103 = vmatpush1.msra.mxu0 0.0
      %2104 = vmatprep.subr.mxu0 0.0
      %2105 = vmatpush1.msra.mxu0 0.0
      %2106 = vmatprep.subr.mxu0 0.0
      %2107 = vmatpush1.msra.mxu0 0.0
      %2108 = vmatprep.subr.mxu0 0.0
      %2109 = vmatpush1.msra.mxu0 0.0
      %2110 = vmatprep.mubr.f32.mxu0 0.0
      %2111 = vmatmul.mubr.f32.gmra.mrb[0].mxu0 %v2035
      %v2112 = vpop.f32.mrb[0].mxu0
      %v2113 = vadd.f32 %v2032, %v2112
      %v2114 = vpop.f32.mrb[0].mxu0
      %2115 = vmatprep.mubr.f32.mxu0 0.0
      %2116 = vmatmul.mubr.f32.gmra.mrb[0].mxu0 %v2038
      %v2117 = vpop.f32.mrb[0].mxu0
      %v2118 = vadd.f32 %v2032, %v2117
      %v2119 = vpop.f32.mrb[0].mxu0
      %2120 = vmatprep.mubr.f32.mxu0 0.0
      %2121 = vmatmul.mubr.f32.gmra.mrb[0].mxu0 %v2041
      %v2122 = vpop.f32.mrb[0].mxu0
      %v2123 = vadd.f32 %v2032, %v2122
      %v2124 = vpop.f32.mrb[0].mxu0
      %2125 = vmatprep.mubr.f32.mxu0 0.0
      %2126 = vmatmul.mubr.f32.gmra.mrb[0].mxu0 %v2044
      %v2127 = vpop.f32.mrb[0].mxu0
      %v2128 = vadd.f32 %v2032, %v2127
      %v2129 = vpop.f32.mrb[0].mxu0
      %2130 = vdwg.mxu0
      %v2131 = vadd.f32 %v2113, %v1907
      %v2132 = vadd.f32 %v2118, %v1908
      %v2133 = vadd.f32 %v2123, %v1909
      %v2134 = vadd.f32 %v2128, %v1910
      %v2135 = vld [vmem:[%s15] sm:$0x1]
      %v2136 = vld [vmem:[%s16] sm:$0x1]
      %v2137 = vsel %vm632, %v2131, 0.0
      %2138 = vadd.xlane.f32.xlu0 %v2137
      %v2139 = vpop.xlane.xlu0 %2138
      %v2140 = vsel %vm632, %v2132, 0.0
      %2141 = vadd.xlane.f32.xlu0 %v2140
      %v2142 = vpop.xlane.xlu0 %2141
      %v2143 = vsel %vm632, %v2133, 0.0
      %2144 = vadd.xlane.f32.xlu0 %v2143
      %v2145 = vpop.xlane.xlu0 %2144
      %v2146 = vsel %vm632, %v2134, 0.0
      %2147 = vadd.xlane.f32.xlu0 %v2146
      %v2148 = vpop.xlane.xlu0 %2147
      %v2149 = vmul.f32 %v2139, %v1850
      %v2150 = vmul.f32 %v2142, %v1850
      %v2151 = vmul.f32 %v2145, %v1850
      %v2152 = vmul.f32 %v2148, %v1850
      %v2153 = vsub.f32 %v2131, %v2149
      %v2154 = vsub.f32 %v2132, %v2150
      %v2155 = vsub.f32 %v2133, %v2151
      %v2156 = vsub.f32 %v2134, %v2152
      %v2157 = vmul.f32 %v2153, %v2153
      %v2158 = vmul.f32 %v2154, %v2154
      %v2159 = vmul.f32 %v2155, %v2155
      %v2160 = vmul.f32 %v2156, %v2156
      %v2161 = vsel %vm632, %v2157, 0.0
      %2162 = vadd.xlane.f32.xlu0 %v2161
      %v2163 = vpop.xlane.xlu0 %2162
      %v2164 = vsel %vm632, %v2158, 0.0
      %2165 = vadd.xlane.f32.xlu0 %v2164
      %v2166 = vpop.xlane.xlu0 %2165
      %v2167 = vsel %vm632, %v2159, 0.0
      %2168 = vadd.xlane.f32.xlu0 %v2167
      %v2169 = vpop.xlane.xlu0 %2168
      %v2170 = vsel %vm632, %v2160, 0.0
      %2171 = vadd.xlane.f32.xlu0 %v2170
      %v2172 = vpop.xlane.xlu0 %2171
      %v2173 = vmul.f32 %v2163, %v1850
      %v2174 = vmul.f32 %v2166, %v1850
      %v2175 = vmul.f32 %v2169, %v1850
      %v2176 = vmul.f32 %v2172, %v1850
      %v2177 = vadd.f32 %v2173, 1e-05
      %v2178 = vadd.f32 %v2174, 1e-05
      %v2179 = vadd.f32 %v2175, 1e-05
      %v2180 = vadd.f32 %v2176, 1e-05
      %v2181 = vrsqrt.pop %v2177
      %v2182 = vrsqrt.pop %v2178
      %v2183 = vrsqrt.pop %v2179
      %v2184 = vrsqrt.pop %v2180
      %v2185 = vmul.f32 %v2153, %v2181
      %v2186 = vmul.f32 %v2154, %v2182
      %v2187 = vmul.f32 %v2155, %v2183
      %v2188 = vmul.f32 %v2156, %v2184
      %v2190 = vlaneseq
      %v2191 = vshrl.u32 %v2190, 7
      %v2192 = vsub.s32 0, %v2191
      %v2193 = vrot.slane %v2135, %v2192
      %v2195 = vmul.f32 %v2185, %v2193
      %v2196 = vmul.f32 %v2186, %v2193
      %v2197 = vmul.f32 %v2187, %v2193
      %v2198 = vmul.f32 %v2188, %v2193
      %v2200 = vlaneseq
      %v2201 = vshrl.u32 %v2200, 7
      %v2202 = vsub.s32 0, %v2201
      %v2203 = vrot.slane %v2136, %v2202
      %v2205 = vadd.f32 %v2195, %v2203
      %v2206 = vadd.f32 %v2196, %v2203
      %v2207 = vadd.f32 %v2197, %v2203
      %v2208 = vadd.f32 %v2198, %v2203
      %v2209 = vld [vmem:[%s604] sm:$0xff]
      %v2210 = vld [vmem:[%s604 + $0x8] sm:$0xff]
      %v2211 = vld [vmem:[%s604 + $0x10] sm:$0xff]
      %v2212 = vld [vmem:[%s604 + $0x18] sm:$0xff]
      %v2213 = vmul.f32 %v2205, %v2209
      %v2214 = vmul.f32 %v2206, %v2210
      %v2215 = vmul.f32 %v2207, %v2211
      %v2216 = vmul.f32 %v2208, %v2212
      %v2217 = vsel %vm632, %v2213, 0.0
      %2218 = vadd.xlane.f32.xlu0 %v2217
      %v2219 = vpop.xlane.xlu0 %2218
      %v2220 = vsel %vm632, %v2214, 0.0
      %2221 = vadd.xlane.f32.xlu0 %v2220
      %v2222 = vpop.xlane.xlu0 %2221
      %v2223 = vsel %vm632, %v2215, 0.0
      %2224 = vadd.xlane.f32.xlu0 %v2223
      %v2225 = vpop.xlane.xlu0 %2224
      %v2226 = vsel %vm632, %v2216, 0.0
      %2227 = vadd.xlane.f32.xlu0 %v2226
      %v2228 = vpop.xlane.xlu0 %2227
      %v2229 = vld [vmem:[%s610] sm:$0xff]
      %v2230 = vld [vmem:[%s610 + $0x8] sm:$0xff]
      %v2231 = vld [vmem:[%s610 + $0x10] sm:$0xff]
      %v2232 = vld [vmem:[%s610 + $0x18] sm:$0xff]
      %v2233 = vmul.f32 %v2205, %v2229
      %v2234 = vmul.f32 %v2206, %v2230
      %v2235 = vmul.f32 %v2207, %v2231
      %v2236 = vmul.f32 %v2208, %v2232
      %v2237 = vsel %vm632, %v2233, 0.0
      %2238 = vadd.xlane.f32.xlu0 %v2237
      %v2239 = vpop.xlane.xlu0 %2238
      %v2240 = vsel %vm632, %v2234, 0.0
      %2241 = vadd.xlane.f32.xlu0 %v2240
      %v2242 = vpop.xlane.xlu0 %2241
      %v2243 = vsel %vm632, %v2235, 0.0
      %2244 = vadd.xlane.f32.xlu0 %v2243
      %v2245 = vpop.xlane.xlu0 %2244
      %v2246 = vsel %vm632, %v2236, 0.0
      %2247 = vadd.xlane.f32.xlu0 %v2246
      %v2248 = vpop.xlane.xlu0 %2247
      %vm2249 = vcmask 7168
      %v2250 = vsel %vm2249, %v2219, %v2239
      %v2251 = vsel %vm2249, %v2222, %v2242
      %v2252 = vsel %vm2249, %v2225, %v2245
      %v2253 = vsel %vm2249, %v2228, %v2248
      %vm2254 = vcmask 15360
      %2255 = vst.msk [vmem:[%s616] sm:$0xff] %vm2254, %v2250
      %2256 = vst.msk [vmem:[%s616 + $0x8] sm:$0xff] %vm2254, %v2251
      %2257 = vst.msk [vmem:[%s616 + $0x10] sm:$0xff] %vm2254, %v2252
      %2258 = vst.msk [vmem:[%s616 + $0x18] sm:$0xff] %vm2254, %v2253
      %s2259 = smul.u32 4, %s28
      %p2260 = scmp.lt.s32.totalorder %s2259, 7
      %s2261 = scalar_select %p2260, %s2259, 7
      %s2262 = smul.addr %s2261, 8
      %s2263 = scalar_lea.vmem %s17, %s2262
      // Predicated region
      $region89: #{tpu_custom_call.1} parent=87 // pred_check
        %p2264 = pneg %p423
      $region90: #{tpu_custom_call.1} parent=87 // pred_check_branch
        %2266 = sbr.rel (%p2264) target = $region92
      $region91: #{tpu_custom_call.1} parent=87 // pred_region
        %s2267 = smul.u32 4, %s28
      $region92: #{tpu_custom_call.1} parent=87 // pred_fallthru
        _
    $region88: #{tpu_custom_call.1} parent=5 // pred_fallthru
      _
    %p2268 = scmp.le.s32.totalorder 2, %s23
    // Predicated region
    $region93: #{tpu_custom_call.1} parent=5 // pred_check
      %p2269 = pneg %p2268
    $region94: #{tpu_custom_call.1} parent=5 // pred_check_branch
      %2271 = sbr.rel (%p2269) target = $region96
    $region95: #{tpu_custom_call.1} parent=5 // pred_region
      %s2272 = ssub.s32 %s23, 2
      // Predicated region
      $region97: #{tpu_custom_call.1} parent=95 // pred_check
        %p2273 = pneg %p429
      $region98: #{tpu_custom_call.1} parent=95 // pred_check_branch
        %2275 = sbr.rel (%p2273) target = $region100
      $region99: #{tpu_custom_call.1} parent=95 // pred_region
        %s2276 = smul.u32 4, %s29
        %p2277 = scmp.lt.s32.totalorder %s2276, 7
        %s2278 = scalar_select %p2277, %s2276, 7
        %s2279 = smul.addr %s2278, 8
        %s2280 = scalar_lea.vmem %s17, %s2279
      $region100: #{tpu_custom_call.1} parent=95 // pred_fallthru
        _
    $region96: #{tpu_custom_call.1} parent=5 // pred_fallthru
      _
  $region6: #{tpu_custom_call.1} parent=0 // loop_footer
    %s27 = sadd.s32 1, %s23
  $region7: #{tpu_custom_call.1} parent=0 // loop_footer_branch
    %22 = sbr.rel target = $region3
  $region8: #{tpu_custom_call.1} parent=0 // loop_exit
    _

</llo_original>
